<compile_context>
chip_gen: v5e
topology: v5e:2x2
jax: 0.10.0
libtpu: 0.0.40
codegen_flags: <defaults>
</compile_context>

<pallas_src>
import functools

import jax
import jax.numpy as jnp
import numpy as np
from jax.experimental import pallas as pl
from jax.experimental.pallas import tpu as pltpu


def _round_up(x, m):
    return (x + m - 1) // m * m


# PyTorch LSTM gate-row order is (i, f, g, o); the kernel wants (i, f, o, g)
# so the three sigmoid gates are one contiguous slab and tanh the last slab.
_GATE_PERM = (0, 1, 3, 2)


def _prep_gate_cols(w, H, Hp):
    """w: [4H, K] PyTorch gate-major weight -> [K, 4*Hp] with columns ordered
    (i, f, o, g), each gate zero-padded from H to Hp lanes."""
    cols = []
    for gidx in _GATE_PERM:
        g = jnp.transpose(w[gidx * H:(gidx + 1) * H, :])          # [K, H]
        cols.append(jnp.pad(g, ((0, 0), (0, Hp - H))))
    return jnp.concatenate(cols, axis=1)                          # [K, 4*Hp]


def _prep_gate_bias(b, H, Hp):
    """b: [4H] -> [1, 4*Hp], gate order (i, f, o, g), per-gate zero padded."""
    parts = [jnp.pad(b[gidx * H:(gidx + 1) * H], (0, Hp - H)) for gidx in _GATE_PERM]
    return jnp.concatenate(parts).reshape(1, 4 * Hp)


def _lstm_kernel(x_ref, wih_ref, whh_ref, b_ref, h0_ref, c0_ref,
                 out_ref, hn_ref, cn_ref, xg_scr,
                 *, hidden_pad, t_chunk, batch):
    t_blk = pl.program_id(0)
    Hp = hidden_pad
    B = batch

    # hn/cn output blocks are VMEM-resident (constant index_map) and double as
    # the recurrent carry across grid steps.
    @pl.when(t_blk == 0)
    def _():
        hn_ref[...] = h0_ref[...]
        cn_ref[...] = c0_ref[...]

    # One MXU pass for the whole chunk's input projection, staged in VMEM so
    # it does not occupy vregs across the unrolled recurrence:
    #   xg[t*B + b, :] = x_t[b] @ W_ih^T + (b_ih + b_hh)
    xg_scr[...] = (jnp.dot(x_ref[...], wih_ref[...],
                           preferred_element_type=jnp.float32)
                   + b_ref[...])

    whh = whh_ref[...]                                  # [Hp, 4Hp] hoisted
    h = hn_ref[...]                                     # [B, Hp] f32 carry
    c = cn_ref[...]                                     # [B, Hp] f32 carry

    # Recurrence over the chunk; statically unrolled -> all slice / store
    # indices are static.  Only h and c stay live across iterations.
    for i in range(t_chunk):
        gates = xg_scr[i * B:(i + 1) * B, :] + jnp.dot(
            h.astype(whh.dtype), whh,
            preferred_element_type=jnp.float32)         # [B, 4Hp]
        sig = jax.nn.sigmoid(gates[:, :3 * Hp])         # one EUP slab: i,f,o
        i_g = sig[:, 0 * Hp:1 * Hp]
        f_g = sig[:, 1 * Hp:2 * Hp]
        o_g = sig[:, 2 * Hp:3 * Hp]
        g_g = jnp.tanh(gates[:, 3 * Hp:4 * Hp])         # one EUP slab: g
        c = f_g * c + i_g * g_g
        h = o_g * jnp.tanh(c)
        out_ref[:, i, :] = h.astype(out_ref.dtype)      # batch-first store

    hn_ref[...] = h
    cn_ref[...] = c


def _pick_chunk(T, B, max_chunk=16):
    """Largest divisor c of T with c <= max_chunk such that the x block
    (c*B rows) and the batch-first out block (c sublanes) are 8-aligned.
    Fallback: the whole sequence (full-array blocks are always legal)."""
    best = None
    for c in range(1, min(T, max_chunk) + 1):
        if T % c == 0 and c % 8 == 0 and (c * B) % 8 == 0:
            best = c
    return best if best is not None else T


def lstm_pallas(x_btd, w_ih, w_hh, b_ih, b_hh, h0, c0, *,
                t_chunk=None, mxu_dtype=jnp.float32):
    """x_btd: [B, T, D_in] (batch_first). h0/c0: [B, H].
    Returns (out [B, T, H], (h_n [B, H], c_n [B, H]))."""
    B, T, D_in = x_btd.shape
    H = h0.shape[-1]
    Hp = _round_up(H, 128)                # lane-align gates & output stores
    if t_chunk is None:
        t_chunk = _pick_chunk(T, B)
    assert T % t_chunk == 0
    assert t_chunk == T or (t_chunk % 8 == 0 and (t_chunk * B) % 8 == 0)

    # Input kept time-major-flattened so the per-chunk input projection is one
    # clean 2-D MXU matmul; the (larger) output is emitted batch-first by the
    # kernel so no output transpose is needed.
    x_flat = jnp.transpose(x_btd, (1, 0, 2)).reshape(T * B, D_in).astype(mxu_dtype)
    wih_p = _prep_gate_cols(w_ih, H, Hp).astype(mxu_dtype)               # [D_in, 4Hp]
    whh_p = jnp.pad(_prep_gate_cols(w_hh, H, Hp),
                    ((0, Hp - H), (0, 0))).astype(mxu_dtype)             # [Hp, 4Hp]
    bias_p = _prep_gate_bias((b_ih + b_hh).astype(jnp.float32), H, Hp)   # [1, 4Hp]
    h0_p = jnp.pad(h0.astype(jnp.float32), ((0, 0), (0, Hp - H)))
    c0_p = jnp.pad(c0.astype(jnp.float32), ((0, 0), (0, Hp - H)))

    kernel = functools.partial(_lstm_kernel, hidden_pad=Hp,
                               t_chunk=t_chunk, batch=B)

    out_p, h_n, c_n = pl.pallas_call(
        kernel,
        out_shape=(
            jax.ShapeDtypeStruct((B, T, Hp), x_btd.dtype),   # batch-first seq out
            jax.ShapeDtypeStruct((B, Hp), jnp.float32),      # h_n (exact f32)
            jax.ShapeDtypeStruct((B, Hp), jnp.float32),      # c_n
        ),
        grid_spec=pltpu.PrefetchScalarGridSpec(
            num_scalar_prefetch=0,
            grid=(T // t_chunk,),
            in_specs=[
                pl.BlockSpec((t_chunk * B, D_in), lambda t: (t, 0)),   # x chunk
                pl.BlockSpec((D_in, 4 * Hp), lambda t: (0, 0)),        # W_ih^T
                pl.BlockSpec((Hp, 4 * Hp), lambda t: (0, 0)),          # W_hh^T
                pl.BlockSpec((1, 4 * Hp), lambda t: (0, 0)),           # bias
                pl.BlockSpec((B, Hp), lambda t: (0, 0)),               # h0
                pl.BlockSpec((B, Hp), lambda t: (0, 0)),               # c0
            ],
            out_specs=[
                pl.BlockSpec((B, t_chunk, Hp), lambda t: (0, t, 0)),   # seq out
                pl.BlockSpec((B, Hp), lambda t: (0, 0)),               # h_n carry
                pl.BlockSpec((B, Hp), lambda t: (0, 0)),               # c_n carry
            ],
            scratch_shapes=[
                pltpu.VMEM((t_chunk * B, 4 * Hp), jnp.float32),        # staged xg
            ],
        ),
        compiler_params=pltpu.CompilerParams(
            dimension_semantics=("arbitrary",),   # time is inherently sequential
        ),
    )(x_flat, wih_p, whh_p, bias_p, h0_p, c0_p)

    # Strip the lane padding (no-op when H is already a multiple of 128).
    return out_p[:, :, :H], (h_n[:, :H], c_n[:, :H])


class RNNPallas:
    """JAX/Pallas port of the PyTorch RNN module (single-layer LSTM, batch_first)."""

    def __init__(self, latent_dim, action_dim, hidden_dim, num_layers=1, key=None):
        assert num_layers == 1, "num_layers > 1 not needed for this module's defaults"
        self.latent_dim = latent_dim
        self.action_dim = action_dim
        self.hidden_dim = hidden_dim
        input_size = latent_dim + action_dim
        H = hidden_dim
        if key is None:
            key = jax.random.PRNGKey(0)
        k1, k2, k3, k4 = jax.random.split(key, 4)
        bound = 1.0 / np.sqrt(H)
        # PyTorch LSTM parameter shapes/init: U(-1/sqrt(H), 1/sqrt(H))
        self.w_ih = jax.random.uniform(k1, (4 * H, input_size), jnp.float32, -bound, bound)
        self.w_hh = jax.random.uniform(k2, (4 * H, H), jnp.float32, -bound, bound)
        self.b_ih = jax.random.uniform(k3, (4 * H,), jnp.float32, -bound, bound)
        self.b_hh = jax.random.uniform(k4, (4 * H,), jnp.float32, -bound, bound)

    def init_hidden(self, batch_size):
        return (jnp.zeros((1, batch_size, self.hidden_dim), jnp.float32),
                jnp.zeros((1, batch_size, self.hidden_dim), jnp.float32))

    def __call__(self, z, a, h=None):
        # z: [B, T, latent_dim], a: [B, T, action_dim]
        x = jnp.concatenate([z, a], axis=-1)     # the cat stays in plain JAX
        B = x.shape[0]
        if h is None:
            h = self.init_hidden(B)
        h0, c0 = h
        out, (h_n, c_n) = lstm_pallas(x, self.w_ih, self.w_hh, self.b_ih, self.b_hh,
                                      h0[0], c0[0])
        # re-add the num_layers dim to match PyTorch's (num_layers, B, H) convention
        return out, (h_n[None], c_n[None])


def _lstm_reference(x, w_ih, w_hh, b_ih, b_hh, h0, c0):
    """Pure-JAX reference for correctness checking (PyTorch gate order i,f,g,o)."""
    H = h0.shape[-1]

    def step(carry, x_t):
        h, c = carry
        gates = x_t @ w_ih.T + h @ w_hh.T + b_ih + b_hh
        i = jax.nn.sigmoid(gates[:, :H])
        f = jax.nn.sigmoid(gates[:, H:2 * H])
        g = jnp.tanh(gates[:, 2 * H:3 * H])
        o = jax.nn.sigmoid(gates[:, 3 * H:4 * H])
        c = f * c + i * g
        h = o * jnp.tanh(c)
        return (h, c), h

    (h_n, c_n), outs = jax.lax.scan(step, (h0, c0), jnp.transpose(x, (1, 0, 2)))
    return jnp.transpose(outs, (1, 0, 2)), (h_n, c_n)


if __name__ == "__main__":
    B, T = 2, 8
    latent_dim, action_dim, hidden_dim = 12, 4, 32

    key = jax.random.PRNGKey(0)
    kz, ka, kp, kz2, ka2 = jax.random.split(key, 5)
    z = jax.random.normal(kz, (B, T, latent_dim), jnp.float32)
    a = jax.random.normal(ka, (B, T, action_dim), jnp.float32)

    rnn = RNNPallas(latent_dim, action_dim, hidden_dim, num_layers=1, key=kp)

    outs, (h_n, c_n) = rnn(z, a, h=None)
    jax.block_until_ready((outs, h_n, c_n))

    # sanity check against pure-JAX LSTM
    x = jnp.concatenate([z, a], axis=-1)
    ref_out, (ref_h, ref_c) = _lstm_reference(
        x, rnn.w_ih, rnn.w_hh, rnn.b_ih, rnn.b_hh,
        jnp.zeros((B, hidden_dim)), jnp.zeros((B, hidden_dim)))
    np.testing.assert_allclose(np.asarray(outs), np.asarray(ref_out), atol=1e-5, rtol=1e-5)
    np.testing.assert_allclose(np.asarray(h_n[0]), np.asarray(ref_h), atol=1e-5, rtol=1e-5)
    np.testing.assert_allclose(np.asarray(c_n[0]), np.asarray(ref_c), atol=1e-5, rtol=1e-5)

    # Multi-chunk path (grid > 1): T=16 with t_chunk=8 validates the resident
    # h/c output-block carry across grid steps and the chunked batch-first
    # output stores.
    T2 = 16
    z2 = jax.random.normal(kz2, (B, T2, latent_dim), jnp.float32)
    a2 = jax.random.normal(ka2, (B, T2, action_dim), jnp.float32)
    x2 = jnp.concatenate([z2, a2], axis=-1)
    out2, (h2, c2) = lstm_pallas(x2, rnn.w_ih, rnn.w_hh, rnn.b_ih, rnn.b_hh,
                                 jnp.zeros((B, hidden_dim)), jnp.zeros((B, hidden_dim)),
                                 t_chunk=8)
    jax.block_until_ready((out2, h2, c2))
    ref_out2, (ref_h2, ref_c2) = _lstm_reference(
        x2, rnn.w_ih, rnn.w_hh, rnn.b_ih, rnn.b_hh,
        jnp.zeros((B, hidden_dim)), jnp.zeros((B, hidden_dim)))
    np.testing.assert_allclose(np.asarray(out2), np.asarray(ref_out2), atol=1e-5, rtol=1e-5)
    np.testing.assert_allclose(np.asarray(h2), np.asarray(ref_h2), atol=1e-5, rtol=1e-5)
    np.testing.assert_allclose(np.asarray(c2), np.asarray(ref_c2), atol=1e-5, rtol=1e-5)

    assert outs.shape == (B, T, hidden_dim)
    assert h_n.shape == (1, B, hidden_dim) and c_n.shape == (1, B, hidden_dim)
    print("KERNEL_OK")
</pallas_src>

<mosaic_0001>
module attributes {stable_mosaic.version = 11 : i64} {
  func.func @_lstm_kernel(%arg0: i32, %arg1: memref<16x16xf32, #tpu.memory_space<vmem>>, %arg2: memref<16x512xf32, #tpu.memory_space<vmem>>, %arg3: memref<128x512xf32, #tpu.memory_space<vmem>>, %arg4: memref<1x512xf32, #tpu.memory_space<vmem>>, %arg5: memref<2x128xf32, #tpu.memory_space<vmem>>, %arg6: memref<2x128xf32, #tpu.memory_space<vmem>>, %arg7: memref<2x8x128xf32, #tpu.memory_space<vmem>>, %arg8: memref<2x128xf32, #tpu.memory_space<vmem>>, %arg9: memref<2x128xf32, #tpu.memory_space<vmem>>, %arg10: memref<16x512xf32, #tpu.memory_space<vmem>>) attributes {dimension_semantics = [#tpu.dimension_semantics<arbitrary>], iteration_bounds = array<i64: 1>, scalar_prefetch = 0 : i64, scratch_operands = 1 : i64, tpu.core_type = #tpu.core_type<tc>, window_params = [{transform_indices = @transform_0, window_bounds = array<i64: 16, 16>}, {pipeline_mode = #tpu.pipeline_mode<synchronous>, transform_indices = @transform_1, window_bounds = array<i64: 16, 512>}, {pipeline_mode = #tpu.pipeline_mode<synchronous>, transform_indices = @transform_2, window_bounds = array<i64: 128, 512>}, {pipeline_mode = #tpu.pipeline_mode<synchronous>, transform_indices = @transform_3, window_bounds = array<i64: 1, 512>}, {pipeline_mode = #tpu.pipeline_mode<synchronous>, transform_indices = @transform_4, window_bounds = array<i64: 2, 128>}, {pipeline_mode = #tpu.pipeline_mode<synchronous>, transform_indices = @transform_5, window_bounds = array<i64: 2, 128>}, {transform_indices = @transform_6, window_bounds = array<i64: 2, 8, 128>}, {pipeline_mode = #tpu.pipeline_mode<synchronous>, transform_indices = @transform_7, window_bounds = array<i64: 2, 128>}, {pipeline_mode = #tpu.pipeline_mode<synchronous>, transform_indices = @transform_8, window_bounds = array<i64: 2, 128>}]} {
    %c0_i32 = arith.constant 0 : i32
    %0 = arith.cmpi eq, %arg0, %c0_i32 : i32
    %1 = arith.extui %0 : i1 to i32
    %c0_i32_0 = arith.constant 0 : i32
    %2 = arith.cmpi ne, %1, %c0_i32_0 : i32
    scf.if %2 {
      %c0_63 = arith.constant 0 : index
      %c0_64 = arith.constant 0 : index
      %191 = vector.load %arg5[%c0_63, %c0_64] : memref<2x128xf32, #tpu.memory_space<vmem>>, vector<2x128xf32>
      %c0_65 = arith.constant 0 : index
      %c0_66 = arith.constant 0 : index
      %192 = vector.load %arg8[%c0_65, %c0_66] : memref<2x128xf32, #tpu.memory_space<vmem>>, vector<2x128xf32>
      tpu.vector_store %arg8[%c0_65, %c0_66], %191 {strides = array<i32>} : memref<2x128xf32, #tpu.memory_space<vmem>>, vector<2x128xf32>,
      %c0_67 = arith.constant 0 : index
      %c0_68 = arith.constant 0 : index
      %193 = vector.load %arg6[%c0_67, %c0_68] : memref<2x128xf32, #tpu.memory_space<vmem>>, vector<2x128xf32>
      %c0_69 = arith.constant 0 : index
      %c0_70 = arith.constant 0 : index
      %194 = vector.load %arg9[%c0_69, %c0_70] : memref<2x128xf32, #tpu.memory_space<vmem>>, vector<2x128xf32>
      tpu.vector_store %arg9[%c0_69, %c0_70], %193 {strides = array<i32>} : memref<2x128xf32, #tpu.memory_space<vmem>>, vector<2x128xf32>,
    } else {
    }
    %c0 = arith.constant 0 : index
    %c0_1 = arith.constant 0 : index
    %3 = vector.load %arg1[%c0, %c0_1] : memref<16x16xf32, #tpu.memory_space<vmem>>, vector<16x16xf32>
    %c0_2 = arith.constant 0 : index
    %c0_3 = arith.constant 0 : index
    %4 = vector.load %arg2[%c0_2, %c0_3] : memref<16x512xf32, #tpu.memory_space<vmem>>, vector<16x512xf32>
    %cst = arith.constant dense<0.000000e+00> : vector<16x512xf32>
    %5 = tpu.matmul %3, %4, %cst {dimension_numbers = #tpu.dot_dimension_numbers<[1], [0], [0], [1], [0, 0, 1, 1], [], []>} : vector<16x16xf32>, vector<16x512xf32>, vector<16x512xf32> -> vector<16x512xf32>
    %c0_4 = arith.constant 0 : index
    %c0_5 = arith.constant 0 : index
    %6 = vector.load %arg4[%c0_4, %c0_5] : memref<1x512xf32, #tpu.memory_space<vmem>>, vector<1x512xf32>
    %7 = vector.broadcast %6 : vector<1x512xf32> to vector<16x512xf32>
    %8 = arith.addf %5, %7 : vector<16x512xf32>
    %c0_6 = arith.constant 0 : index
    %c0_7 = arith.constant 0 : index
    %9 = vector.load %arg10[%c0_6, %c0_7] : memref<16x512xf32, #tpu.memory_space<vmem>>, vector<16x512xf32>
    tpu.vector_store %arg10[%c0_6, %c0_7], %8 {strides = array<i32>} : memref<16x512xf32, #tpu.memory_space<vmem>>, vector<16x512xf32>,
    %c0_8 = arith.constant 0 : index
    %c0_9 = arith.constant 0 : index
    %10 = vector.load %arg3[%c0_8, %c0_9] : memref<128x512xf32, #tpu.memory_space<vmem>>, vector<128x512xf32>
    %c0_10 = arith.constant 0 : index
    %c0_11 = arith.constant 0 : index
    %11 = vector.load %arg8[%c0_10, %c0_11] : memref<2x128xf32, #tpu.memory_space<vmem>>, vector<2x128xf32>
    %c0_12 = arith.constant 0 : index
    %c0_13 = arith.constant 0 : index
    %12 = vector.load %arg9[%c0_12, %c0_13] : memref<2x128xf32, #tpu.memory_space<vmem>>, vector<2x128xf32>
    %c0_14 = arith.constant 0 : index
    %c0_15 = arith.constant 0 : index
    %13 = vector.load %arg10[%c0_14, %c0_15] : memref<16x512xf32, #tpu.memory_space<vmem>>, vector<2x512xf32>
    %cst_16 = arith.constant dense<0.000000e+00> : vector<2x512xf32>
    %14 = tpu.matmul %11, %10, %cst_16 {dimension_numbers = #tpu.dot_dimension_numbers<[1], [0], [0], [1], [0, 0, 1, 1], [], []>} : vector<2x128xf32>, vector<128x512xf32>, vector<2x512xf32> -> vector<2x512xf32>
    %15 = arith.addf %13, %14 : vector<2x512xf32>
    %16 = vector.extract_strided_slice %15 {offsets = [0, 0], sizes = [2, 384], strides = [1, 1]} : vector<2x512xf32> to vector<2x384xf32>
    %17 = arith.negf %16 : vector<2x384xf32>
    %18 = math.exp %17 : vector<2x384xf32>
    %cst_17 = arith.constant 1.000000e+00 : f32
    %19 = vector.broadcast %cst_17 : f32 to vector<2x384xf32>
    %20 = arith.addf %19, %18 : vector<2x384xf32>
    %21 = arith.divf %19, %20 : vector<2x384xf32>
    %22 = vector.extract_strided_slice %21 {offsets = [0, 0], sizes = [2, 128], strides = [1, 1]} : vector<2x384xf32> to vector<2x128xf32>
    %23 = vector.extract_strided_slice %21 {offsets = [0, 128], sizes = [2, 128], strides = [1, 1]} : vector<2x384xf32> to vector<2x128xf32>
    %24 = vector.extract_strided_slice %21 {offsets = [0, 256], sizes = [2, 128], strides = [1, 1]} : vector<2x384xf32> to vector<2x128xf32>
    %25 = vector.extract_strided_slice %15 {offsets = [0, 384], sizes = [2, 128], strides = [1, 1]} : vector<2x512xf32> to vector<2x128xf32>
    %26 = math.tanh %25 : vector<2x128xf32>
    %27 = arith.mulf %23, %12 : vector<2x128xf32>
    %28 = arith.mulf %22, %26 : vector<2x128xf32>
    %29 = arith.addf %27, %28 : vector<2x128xf32>
    %30 = math.tanh %29 : vector<2x128xf32>
    %31 = arith.mulf %24, %30 : vector<2x128xf32>
    %c0_18 = arith.constant 0 : index
    %c0_19 = arith.constant 0 : index
    %c0_20 = arith.constant 0 : index
    %32 = vector.load %arg7[%c0_18, %c0_19, %c0_20] : memref<2x8x128xf32, #tpu.memory_space<vmem>>, vector<2x1x128xf32>
    %33 = vector.shape_cast %32 : vector<2x1x128xf32> to vector<2x128xf32>
    %34 = vector.shape_cast %31 : vector<2x128xf32> to vector<2x1x128xf32>
    tpu.vector_store %arg7[%c0_18, %c0_19, %c0_20], %34 {strides = array<i32>} : memref<2x8x128xf32, #tpu.memory_space<vmem>>, vector<2x1x128xf32>,
    %c2 = arith.constant 2 : index
    %c0_21 = arith.constant 0 : index
    %35 = vector.load %arg10[%c2, %c0_21] : memref<16x512xf32, #tpu.memory_space<vmem>>, vector<2x512xf32>
    %cst_22 = arith.constant dense<0.000000e+00> : vector<2x512xf32>
    %36 = tpu.matmul %31, %10, %cst_22 {dimension_numbers = #tpu.dot_dimension_numbers<[1], [0], [0], [1], [0, 0, 1, 1], [], []>} : vector<2x128xf32>, vector<128x512xf32>, vector<2x512xf32> -> vector<2x512xf32>
    %37 = arith.addf %35, %36 : vector<2x512xf32>
    %38 = vector.extract_strided_slice %37 {offsets = [0, 0], sizes = [2, 384], strides = [1, 1]} : vector<2x512xf32> to vector<2x384xf32>
    %39 = arith.negf %38 : vector<2x384xf32>
    %40 = math.exp %39 : vector<2x384xf32>
    %cst_23 = arith.constant 1.000000e+00 : f32
    %41 = vector.broadcast %cst_23 : f32 to vector<2x384xf32>
    %42 = arith.addf %41, %40 : vector<2x384xf32>
    %43 = arith.divf %41, %42 : vector<2x384xf32>
    %44 = vector.extract_strided_slice %43 {offsets = [0, 0], sizes = [2, 128], strides = [1, 1]} : vector<2x384xf32> to vector<2x128xf32>
    %45 = vector.extract_strided_slice %43 {offsets = [0, 128], sizes = [2, 128], strides = [1, 1]} : vector<2x384xf32> to vector<2x128xf32>
    %46 = vector.extract_strided_slice %43 {offsets = [0, 256], sizes = [2, 128], strides = [1, 1]} : vector<2x384xf32> to vector<2x128xf32>
    %47 = vector.extract_strided_slice %37 {offsets = [0, 384], sizes = [2, 128], strides = [1, 1]} : vector<2x512xf32> to vector<2x128xf32>
    %48 = math.tanh %47 : vector<2x128xf32>
    %49 = arith.mulf %45, %29 : vector<2x128xf32>
    %50 = arith.mulf %44, %48 : vector<2x128xf32>
    %51 = arith.addf %49, %50 : vector<2x128xf32>
    %52 = math.tanh %51 : vector<2x128xf32>
    %53 = arith.mulf %46, %52 : vector<2x128xf32>
    %c0_24 = arith.constant 0 : index
    %c1 = arith.constant 1 : index
    %c0_25 = arith.constant 0 : index
    %54 = vector.load %arg7[%c0_24, %c1, %c0_25] : memref<2x8x128xf32, #tpu.memory_space<vmem>>, vector<2x1x128xf32>
    %55 = vector.shape_cast %54 : vector<2x1x128xf32> to vector<2x128xf32>
    %56 = vector.shape_cast %53 : vector<2x128xf32> to vector<2x1x128xf32>
    tpu.vector_store %arg7[%c0_24, %c1, %c0_25], %56 {strides = array<i32>} : memref<2x8x128xf32, #tpu.memory_space<vmem>>, vector<2x1x128xf32>,
    %c4 = arith.constant 4 : index
    %c0_26 = arith.constant 0 : index
    %57 = vector.load %arg10[%c4, %c0_26] : memref<16x512xf32, #tpu.memory_space<vmem>>, vector<2x512xf32>
    %cst_27 = arith.constant dense<0.000000e+00> : vector<2x512xf32>
    %58 = tpu.matmul %53, %10, %cst_27 {dimension_numbers = #tpu.dot_dimension_numbers<[1], [0], [0], [1], [0, 0, 1, 1], [], []>} : vector<2x128xf32>, vector<128x512xf32>, vector<2x512xf32> -> vector<2x512xf32>
    %59 = arith.addf %57, %58 : vector<2x512xf32>
    %60 = vector.extract_strided_slice %59 {offsets = [0, 0], sizes = [2, 384], strides = [1, 1]} : vector<2x512xf32> to vector<2x384xf32>
    %61 = arith.negf %60 : vector<2x384xf32>
    %62 = math.exp %61 : vector<2x384xf32>
    %cst_28 = arith.constant 1.000000e+00 : f32
    %63 = vector.broadcast %cst_28 : f32 to vector<2x384xf32>
    %64 = arith.addf %63, %62 : vector<2x384xf32>
    %65 = arith.divf %63, %64 : vector<2x384xf32>
    %66 = vector.extract_strided_slice %65 {offsets = [0, 0], sizes = [2, 128], strides = [1, 1]} : vector<2x384xf32> to vector<2x128xf32>
    %67 = vector.extract_strided_slice %65 {offsets = [0, 128], sizes = [2, 128], strides = [1, 1]} : vector<2x384xf32> to vector<2x128xf32>
    %68 = vector.extract_strided_slice %65 {offsets = [0, 256], sizes = [2, 128], strides = [1, 1]} : vector<2x384xf32> to vector<2x128xf32>
    %69 = vector.extract_strided_slice %59 {offsets = [0, 384], sizes = [2, 128], strides = [1, 1]} : vector<2x512xf32> to vector<2x128xf32>
    %70 = math.tanh %69 : vector<2x128xf32>
    %71 = arith.mulf %67, %51 : vector<2x128xf32>
    %72 = arith.mulf %66, %70 : vector<2x128xf32>
    %73 = arith.addf %71, %72 : vector<2x128xf32>
    %74 = math.tanh %73 : vector<2x128xf32>
    %75 = arith.mulf %68, %74 : vector<2x128xf32>
    %c0_29 = arith.constant 0 : index
    %c2_30 = arith.constant 2 : index
    %c0_31 = arith.constant 0 : index
    %76 = vector.load %arg7[%c0_29, %c2_30, %c0_31] : memref<2x8x128xf32, #tpu.memory_space<vmem>>, vector<2x1x128xf32>
    %77 = vector.shape_cast %76 : vector<2x1x128xf32> to vector<2x128xf32>
    %78 = vector.shape_cast %75 : vector<2x128xf32> to vector<2x1x128xf32>
    tpu.vector_store %arg7[%c0_29, %c2_30, %c0_31], %78 {strides = array<i32>} : memref<2x8x128xf32, #tpu.memory_space<vmem>>, vector<2x1x128xf32>,
    %c6 = arith.constant 6 : index
    %c0_32 = arith.constant 0 : index
    %79 = vector.load %arg10[%c6, %c0_32] : memref<16x512xf32, #tpu.memory_space<vmem>>, vector<2x512xf32>
    %cst_33 = arith.constant dense<0.000000e+00> : vector<2x512xf32>
    %80 = tpu.matmul %75, %10, %cst_33 {dimension_numbers = #tpu.dot_dimension_numbers<[1], [0], [0], [1], [0, 0, 1, 1], [], []>} : vector<2x128xf32>, vector<128x512xf32>, vector<2x512xf32> -> vector<2x512xf32>
    %81 = arith.addf %79, %80 : vector<2x512xf32>
    %82 = vector.extract_strided_slice %81 {offsets = [0, 0], sizes = [2, 384], strides = [1, 1]} : vector<2x512xf32> to vector<2x384xf32>
    %83 = arith.negf %82 : vector<2x384xf32>
    %84 = math.exp %83 : vector<2x384xf32>
    %cst_34 = arith.constant 1.000000e+00 : f32
    %85 = vector.broadcast %cst_34 : f32 to vector<2x384xf32>
    %86 = arith.addf %85, %84 : vector<2x384xf32>
    %87 = arith.divf %85, %86 : vector<2x384xf32>
    %88 = vector.extract_strided_slice %87 {offsets = [0, 0], sizes = [2, 128], strides = [1, 1]} : vector<2x384xf32> to vector<2x128xf32>
    %89 = vector.extract_strided_slice %87 {offsets = [0, 128], sizes = [2, 128], strides = [1, 1]} : vector<2x384xf32> to vector<2x128xf32>
    %90 = vector.extract_strided_slice %87 {offsets = [0, 256], sizes = [2, 128], strides = [1, 1]} : vector<2x384xf32> to vector<2x128xf32>
    %91 = vector.extract_strided_slice %81 {offsets = [0, 384], sizes = [2, 128], strides = [1, 1]} : vector<2x512xf32> to vector<2x128xf32>
    %92 = math.tanh %91 : vector<2x128xf32>
    %93 = arith.mulf %89, %73 : vector<2x128xf32>
    %94 = arith.mulf %88, %92 : vector<2x128xf32>
    %95 = arith.addf %93, %94 : vector<2x128xf32>
    %96 = math.tanh %95 : vector<2x128xf32>
    %97 = arith.mulf %90, %96 : vector<2x128xf32>
    %c0_35 = arith.constant 0 : index
    %c3 = arith.constant 3 : index
    %c0_36 = arith.constant 0 : index
    %98 = vector.load %arg7[%c0_35, %c3, %c0_36] : memref<2x8x128xf32, #tpu.memory_space<vmem>>, vector<2x1x128xf32>
    %99 = vector.shape_cast %98 : vector<2x1x128xf32> to vector<2x128xf32>
    %100 = vector.shape_cast %97 : vector<2x128xf32> to vector<2x1x128xf32>
    tpu.vector_store %arg7[%c0_35, %c3, %c0_36], %100 {strides = array<i32>} : memref<2x8x128xf32, #tpu.memory_space<vmem>>, vector<2x1x128xf32>,
    %c8 = arith.constant 8 : index
    %c0_37 = arith.constant 0 : index
    %101 = vector.load %arg10[%c8, %c0_37] : memref<16x512xf32, #tpu.memory_space<vmem>>, vector<2x512xf32>
    %cst_38 = arith.constant dense<0.000000e+00> : vector<2x512xf32>
    %102 = tpu.matmul %97, %10, %cst_38 {dimension_numbers = #tpu.dot_dimension_numbers<[1], [0], [0], [1], [0, 0, 1, 1], [], []>} : vector<2x128xf32>, vector<128x512xf32>, vector<2x512xf32> -> vector<2x512xf32>
    %103 = arith.addf %101, %102 : vector<2x512xf32>
    %104 = vector.extract_strided_slice %103 {offsets = [0, 0], sizes = [2, 384], strides = [1, 1]} : vector<2x512xf32> to vector<2x384xf32>
    %105 = arith.negf %104 : vector<2x384xf32>
    %106 = math.exp %105 : vector<2x384xf32>
    %cst_39 = arith.constant 1.000000e+00 : f32
    %107 = vector.broadcast %cst_39 : f32 to vector<2x384xf32>
    %108 = arith.addf %107, %106 : vector<2x384xf32>
    %109 = arith.divf %107, %108 : vector<2x384xf32>
    %110 = vector.extract_strided_slice %109 {offsets = [0, 0], sizes = [2, 128], strides = [1, 1]} : vector<2x384xf32> to vector<2x128xf32>
    %111 = vector.extract_strided_slice %109 {offsets = [0, 128], sizes = [2, 128], strides = [1, 1]} : vector<2x384xf32> to vector<2x128xf32>
    %112 = vector.extract_strided_slice %109 {offsets = [0, 256], sizes = [2, 128], strides = [1, 1]} : vector<2x384xf32> to vector<2x128xf32>
    %113 = vector.extract_strided_slice %103 {offsets = [0, 384], sizes = [2, 128], strides = [1, 1]} : vector<2x512xf32> to vector<2x128xf32>
    %114 = math.tanh %113 : vector<2x128xf32>
    %115 = arith.mulf %111, %95 : vector<2x128xf32>
    %116 = arith.mulf %110, %114 : vector<2x128xf32>
    %117 = arith.addf %115, %116 : vector<2x128xf32>
    %118 = math.tanh %117 : vector<2x128xf32>
    %119 = arith.mulf %112, %118 : vector<2x128xf32>
    %c0_40 = arith.constant 0 : index
    %c4_41 = arith.constant 4 : index
    %c0_42 = arith.constant 0 : index
    %120 = vector.load %arg7[%c0_40, %c4_41, %c0_42] : memref<2x8x128xf32, #tpu.memory_space<vmem>>, vector<2x1x128xf32>
    %121 = vector.shape_cast %120 : vector<2x1x128xf32> to vector<2x128xf32>
    %122 = vector.shape_cast %119 : vector<2x128xf32> to vector<2x1x128xf32>
    tpu.vector_store %arg7[%c0_40, %c4_41, %c0_42], %122 {strides = array<i32>} : memref<2x8x128xf32, #tpu.memory_space<vmem>>, vector<2x1x128xf32>,
    %c10 = arith.constant 10 : index
    %c0_43 = arith.constant 0 : index
    %123 = vector.load %arg10[%c10, %c0_43] : memref<16x512xf32, #tpu.memory_space<vmem>>, vector<2x512xf32>
    %cst_44 = arith.constant dense<0.000000e+00> : vector<2x512xf32>
    %124 = tpu.matmul %119, %10, %cst_44 {dimension_numbers = #tpu.dot_dimension_numbers<[1], [0], [0], [1], [0, 0, 1, 1], [], []>} : vector<2x128xf32>, vector<128x512xf32>, vector<2x512xf32> -> vector<2x512xf32>
    %125 = arith.addf %123, %124 : vector<2x512xf32>
    %126 = vector.extract_strided_slice %125 {offsets = [0, 0], sizes = [2, 384], strides = [1, 1]} : vector<2x512xf32> to vector<2x384xf32>
    %127 = arith.negf %126 : vector<2x384xf32>
    %128 = math.exp %127 : vector<2x384xf32>
    %cst_45 = arith.constant 1.000000e+00 : f32
    %129 = vector.broadcast %cst_45 : f32 to vector<2x384xf32>
    %130 = arith.addf %129, %128 : vector<2x384xf32>
    %131 = arith.divf %129, %130 : vector<2x384xf32>
    %132 = vector.extract_strided_slice %131 {offsets = [0, 0], sizes = [2, 128], strides = [1, 1]} : vector<2x384xf32> to vector<2x128xf32>
    %133 = vector.extract_strided_slice %131 {offsets = [0, 128], sizes = [2, 128], strides = [1, 1]} : vector<2x384xf32> to vector<2x128xf32>
    %134 = vector.extract_strided_slice %131 {offsets = [0, 256], sizes = [2, 128], strides = [1, 1]} : vector<2x384xf32> to vector<2x128xf32>
    %135 = vector.extract_strided_slice %125 {offsets = [0, 384], sizes = [2, 128], strides = [1, 1]} : vector<2x512xf32> to vector<2x128xf32>
    %136 = math.tanh %135 : vector<2x128xf32>
    %137 = arith.mulf %133, %117 : vector<2x128xf32>
    %138 = arith.mulf %132, %136 : vector<2x128xf32>
    %139 = arith.addf %137, %138 : vector<2x128xf32>
    %140 = math.tanh %139 : vector<2x128xf32>
    %141 = arith.mulf %134, %140 : vector<2x128xf32>
    %c0_46 = arith.constant 0 : index
    %c5 = arith.constant 5 : index
    %c0_47 = arith.constant 0 : index
    %142 = vector.load %arg7[%c0_46, %c5, %c0_47] : memref<2x8x128xf32, #tpu.memory_space<vmem>>, vector<2x1x128xf32>
    %143 = vector.shape_cast %142 : vector<2x1x128xf32> to vector<2x128xf32>
    %144 = vector.shape_cast %141 : vector<2x128xf32> to vector<2x1x128xf32>
    tpu.vector_store %arg7[%c0_46, %c5, %c0_47], %144 {strides = array<i32>} : memref<2x8x128xf32, #tpu.memory_space<vmem>>, vector<2x1x128xf32>,
    %c12 = arith.constant 12 : index
    %c0_48 = arith.constant 0 : index
    %145 = vector.load %arg10[%c12, %c0_48] : memref<16x512xf32, #tpu.memory_space<vmem>>, vector<2x512xf32>
    %cst_49 = arith.constant dense<0.000000e+00> : vector<2x512xf32>
    %146 = tpu.matmul %141, %10, %cst_49 {dimension_numbers = #tpu.dot_dimension_numbers<[1], [0], [0], [1], [0, 0, 1, 1], [], []>} : vector<2x128xf32>, vector<128x512xf32>, vector<2x512xf32> -> vector<2x512xf32>
    %147 = arith.addf %145, %146 : vector<2x512xf32>
    %148 = vector.extract_strided_slice %147 {offsets = [0, 0], sizes = [2, 384], strides = [1, 1]} : vector<2x512xf32> to vector<2x384xf32>
    %149 = arith.negf %148 : vector<2x384xf32>
    %150 = math.exp %149 : vector<2x384xf32>
    %cst_50 = arith.constant 1.000000e+00 : f32
    %151 = vector.broadcast %cst_50 : f32 to vector<2x384xf32>
    %152 = arith.addf %151, %150 : vector<2x384xf32>
    %153 = arith.divf %151, %152 : vector<2x384xf32>
    %154 = vector.extract_strided_slice %153 {offsets = [0, 0], sizes = [2, 128], strides = [1, 1]} : vector<2x384xf32> to vector<2x128xf32>
    %155 = vector.extract_strided_slice %153 {offsets = [0, 128], sizes = [2, 128], strides = [1, 1]} : vector<2x384xf32> to vector<2x128xf32>
    %156 = vector.extract_strided_slice %153 {offsets = [0, 256], sizes = [2, 128], strides = [1, 1]} : vector<2x384xf32> to vector<2x128xf32>
    %157 = vector.extract_strided_slice %147 {offsets = [0, 384], sizes = [2, 128], strides = [1, 1]} : vector<2x512xf32> to vector<2x128xf32>
    %158 = math.tanh %157 : vector<2x128xf32>
    %159 = arith.mulf %155, %139 : vector<2x128xf32>
    %160 = arith.mulf %154, %158 : vector<2x128xf32>
    %161 = arith.addf %159, %160 : vector<2x128xf32>
    %162 = math.tanh %161 : vector<2x128xf32>
    %163 = arith.mulf %156, %162 : vector<2x128xf32>
    %c0_51 = arith.constant 0 : index
    %c6_52 = arith.constant 6 : index
    %c0_53 = arith.constant 0 : index
    %164 = vector.load %arg7[%c0_51, %c6_52, %c0_53] : memref<2x8x128xf32, #tpu.memory_space<vmem>>, vector<2x1x128xf32>
    %165 = vector.shape_cast %164 : vector<2x1x128xf32> to vector<2x128xf32>
    %166 = vector.shape_cast %163 : vector<2x128xf32> to vector<2x1x128xf32>
    tpu.vector_store %arg7[%c0_51, %c6_52, %c0_53], %166 {strides = array<i32>} : memref<2x8x128xf32, #tpu.memory_space<vmem>>, vector<2x1x128xf32>,
    %c14 = arith.constant 14 : index
    %c0_54 = arith.constant 0 : index
    %167 = vector.load %arg10[%c14, %c0_54] : memref<16x512xf32, #tpu.memory_space<vmem>>, vector<2x512xf32>
    %cst_55 = arith.constant dense<0.000000e+00> : vector<2x512xf32>
    %168 = tpu.matmul %163, %10, %cst_55 {dimension_numbers = #tpu.dot_dimension_numbers<[1], [0], [0], [1], [0, 0, 1, 1], [], []>} : vector<2x128xf32>, vector<128x512xf32>, vector<2x512xf32> -> vector<2x512xf32>
    %169 = arith.addf %167, %168 : vector<2x512xf32>
    %170 = vector.extract_strided_slice %169 {offsets = [0, 0], sizes = [2, 384], strides = [1, 1]} : vector<2x512xf32> to vector<2x384xf32>
    %171 = arith.negf %170 : vector<2x384xf32>
    %172 = math.exp %171 : vector<2x384xf32>
    %cst_56 = arith.constant 1.000000e+00 : f32
    %173 = vector.broadcast %cst_56 : f32 to vector<2x384xf32>
    %174 = arith.addf %173, %172 : vector<2x384xf32>
    %175 = arith.divf %173, %174 : vector<2x384xf32>
    %176 = vector.extract_strided_slice %175 {offsets = [0, 0], sizes = [2, 128], strides = [1, 1]} : vector<2x384xf32> to vector<2x128xf32>
    %177 = vector.extract_strided_slice %175 {offsets = [0, 128], sizes = [2, 128], strides = [1, 1]} : vector<2x384xf32> to vector<2x128xf32>
    %178 = vector.extract_strided_slice %175 {offsets = [0, 256], sizes = [2, 128], strides = [1, 1]} : vector<2x384xf32> to vector<2x128xf32>
    %179 = vector.extract_strided_slice %169 {offsets = [0, 384], sizes = [2, 128], strides = [1, 1]} : vector<2x512xf32> to vector<2x128xf32>
    %180 = math.tanh %179 : vector<2x128xf32>
    %181 = arith.mulf %177, %161 : vector<2x128xf32>
    %182 = arith.mulf %176, %180 : vector<2x128xf32>
    %183 = arith.addf %181, %182 : vector<2x128xf32>
    %184 = math.tanh %183 : vector<2x128xf32>
    %185 = arith.mulf %178, %184 : vector<2x128xf32>
    %c0_57 = arith.constant 0 : index
    %c7 = arith.constant 7 : index
    %c0_58 = arith.constant 0 : index
    %186 = vector.load %arg7[%c0_57, %c7, %c0_58] : memref<2x8x128xf32, #tpu.memory_space<vmem>>, vector<2x1x128xf32>
    %187 = vector.shape_cast %186 : vector<2x1x128xf32> to vector<2x128xf32>
    %188 = vector.shape_cast %185 : vector<2x128xf32> to vector<2x1x128xf32>
    tpu.vector_store %arg7[%c0_57, %c7, %c0_58], %188 {strides = array<i32>} : memref<2x8x128xf32, #tpu.memory_space<vmem>>, vector<2x1x128xf32>,
    %c0_59 = arith.constant 0 : index
    %c0_60 = arith.constant 0 : index
    %189 = vector.load %arg8[%c0_59, %c0_60] : memref<2x128xf32, #tpu.memory_space<vmem>>, vector<2x128xf32>
    tpu.vector_store %arg8[%c0_59, %c0_60], %185 {strides = array<i32>} : memref<2x128xf32, #tpu.memory_space<vmem>>, vector<2x128xf32>,
    %c0_61 = arith.constant 0 : index
    %c0_62 = arith.constant 0 : index
    %190 = vector.load %arg9[%c0_61, %c0_62] : memref<2x128xf32, #tpu.memory_space<vmem>>, vector<2x128xf32>
    tpu.vector_store %arg9[%c0_61, %c0_62], %183 {strides = array<i32>} : memref<2x128xf32, #tpu.memory_space<vmem>>, vector<2x128xf32>,
    return
  }
  func.func @transform_0(%arg0: i32) -> (i32, i32) {
    %c0_i32 = arith.constant 0 : i32
    %c0_i32_0 = arith.constant 0 : i32
    return %arg0, %c0_i32 : i32, i32
  }
  func.func @transform_1(%arg0: i32) -> (i32, i32) {
    %c0_i32 = arith.constant 0 : i32
    %c0_i32_0 = arith.constant 0 : i32
    %c0_i32_1 = arith.constant 0 : i32
    return %c0_i32, %c0_i32_0 : i32, i32
  }
  func.func @transform_2(%arg0: i32) -> (i32, i32) {
    %c0_i32 = arith.constant 0 : i32
    %c0_i32_0 = arith.constant 0 : i32
    %c0_i32_1 = arith.constant 0 : i32
    return %c0_i32, %c0_i32_0 : i32, i32
  }
  func.func @transform_3(%arg0: i32) -> (i32, i32) {
    %c0_i32 = arith.constant 0 : i32
    %c0_i32_0 = arith.constant 0 : i32
    %c0_i32_1 = arith.constant 0 : i32
    return %c0_i32, %c0_i32_0 : i32, i32
  }
  func.func @transform_4(%arg0: i32) -> (i32, i32) {
    %c0_i32 = arith.constant 0 : i32
    %c0_i32_0 = arith.constant 0 : i32
    %c0_i32_1 = arith.constant 0 : i32
    return %c0_i32, %c0_i32_0 : i32, i32
  }
  func.func @transform_5(%arg0: i32) -> (i32, i32) {
    %c0_i32 = arith.constant 0 : i32
    %c0_i32_0 = arith.constant 0 : i32
    %c0_i32_1 = arith.constant 0 : i32
    return %c0_i32, %c0_i32_0 : i32, i32
  }
  func.func @transform_6(%arg0: i32) -> (i32, i32, i32) {
    %c0_i32 = arith.constant 0 : i32
    %c0_i32_0 = arith.constant 0 : i32
    %c0_i32_1 = arith.constant 0 : i32
    return %c0_i32, %arg0, %c0_i32_0 : i32, i32, i32
  }
  func.func @transform_7(%arg0: i32) -> (i32, i32) {
    %c0_i32 = arith.constant 0 : i32
    %c0_i32_0 = arith.constant 0 : i32
    %c0_i32_1 = arith.constant 0 : i32
    return %c0_i32, %c0_i32_0 : i32, i32
  }
  func.func @transform_8(%arg0: i32) -> (i32, i32) {
    %c0_i32 = arith.constant 0 : i32
    %c0_i32_0 = arith.constant 0 : i32
    %c0_i32_1 = arith.constant 0 : i32
    return %c0_i32, %c0_i32_0 : i32, i32
  }
}

</mosaic_0001>

<llo_original>
// kernel: tpu_custom_call.1
$region0: #{tpu_custom_call.1}
  #allocation0 [shape = 'u32[]', space=smem, size = 0x4, offset = 0x4, fixed_abs, tag = 'smem constant byte address 0x4 - core index']
  #allocation1 [shape = 'u32[72,128]{1,0:T(1,128)}', space=vmem, size = 0x9000, scoped, tag = 'internal scratch']
  #allocation2 [shape = 'f32[16,512]{1,0:T(8,128)}', space=vmem, size = 0x8000, scoped, tag = 'scratch operand']
  %s0 = inlined_call_operand.hbm [shape: f32[16,16], index: 0, kind: input, shape index: {}]
  %s1 = inlined_call_operand.hbm [shape: f32[16,512], index: 1, kind: input, shape index: {}]
  %s2 = inlined_call_operand.hbm [shape: f32[128,512], index: 2, kind: input, shape index: {}]
  %s3 = inlined_call_operand.hbm [shape: f32[1,512], index: 3, kind: input, shape index: {}]
  %s4 = inlined_call_operand.vmem [shape: f32[2,128], index: 4, kind: input, shape index: {}]
  %s5 = inlined_call_operand.vmem [shape: f32[2,128], index: 5, kind: input, shape index: {}]
  %s6 = inlined_call_operand.hbm [shape: f32[2,8,128], index: 6, kind: output, shape index: {0}]
  %s7 = inlined_call_operand.hbm [shape: f32[2,128], index: 7, kind: output, shape index: {1}]
  %s8 = inlined_call_operand.hbm [shape: f32[2,128], index: 8, kind: output, shape index: {2}]
  %9 = xla_tuple %s6, %s7, %s8
  %s10 = sld [smem:[#allocation0]]
  $region70: #{tpu_custom_call.1} parent=0
    _
  %s12 = ssub.s32 1, %s10
  %s13 = scalar_select 0, %s12, %s10
  $region1: #{tpu_custom_call.1} parent=0
    #allocation3 [shape = 'u8[8192]{0}', space=vmem, size = 0x2000, scoped, tag = 'input window, operand 0, single buffered']
    #allocation4 [shape = 's32[1]{0}', space=sflag, size = 0x4, scoped, tag = 'scoped memory for tpu_custom_call.1']
    #allocation5 [shape = 's32[1]{0}', space=sflag, size = 0x4, scoped, tag = 'scoped memory for tpu_custom_call.1']
    #allocation6 [shape = 'u8[32768]{0}', space=vmem, size = 0x8000, scoped, tag = 'input window, operand 1, single buffered']
    #allocation7 [shape = 's32[1]{0}', space=sflag, size = 0x4, scoped, tag = 'scoped memory for tpu_custom_call.1']
    #allocation8 [shape = 'u8[262144]{0}', space=vmem, size = 0x40000, scoped, tag = 'input window, operand 2, single buffered']
    #allocation9 [shape = 'u8[2048]{0}', space=vmem, size = 0x800, scoped, tag = 'input window, operand 3, single buffered']
    #allocation10 [shape = 's32[1]{0}', space=sflag, size = 0x4, scoped, tag = 'scoped memory for tpu_custom_call.1']
    #allocation11 [shape = 'u8[8192]{0}', space=vmem, size = 0x2000, scoped, tag = 'output window, operand 0, single buffered']
    #allocation12 [shape = 'u8[1024]{0}', space=vmem, size = 0x400, scoped, tag = 'output window, operand 1, single buffered']
    #allocation13 [shape = 's32[1]{0}', space=sflag, size = 0x4, scoped, tag = 'scoped memory for tpu_custom_call.1']
    #allocation14 [shape = 'u8[1024]{0}', space=vmem, size = 0x400, scoped, tag = 'output window, operand 2, single buffered']
    %14 = vsyncpa [#allocation4], 0
    %15 = vsyncpa [#allocation7], 0
    %16 = vsyncpa [#allocation10], 0
    %17 = vsyncpa [#allocation5], 0
    %18 = vsyncpa [#allocation13], 0
    // Predicated region
    $region2: #{tpu_custom_call.1} parent=1 // pred_check
      _
    $region3: #{tpu_custom_call.1} parent=1 // pred_check_branch
      %20 = sbr.rel (0) target = $region5
    $region4: #{tpu_custom_call.1} parent=1 // pred_region
      %22 = vsyncadd [#allocation4], 0
      %s23 = sshll.u32 %s0, 4
      %s24 = int_to_ptr.hbm [resolvable:$true] %s23
      %s25 = sshll.u32 [#allocation3], 4
      %s26 = int_to_ptr.vmem [resolvable:$true] %s25
      %31 = dma.hbm_to_vmem [thread:$0]  %s24, 256, %s26, [#allocation4], 128, 128, 8
    $region5: #{tpu_custom_call.1} parent=1 // pred_fallthru
      _
    // Predicated region
    $region6: #{tpu_custom_call.1} parent=1 // pred_check
      _
    $region7: #{tpu_custom_call.1} parent=1 // pred_check_branch
      %33 = sbr.rel (0) target = $region9
    $region8: #{tpu_custom_call.1} parent=1 // pred_region
      %35 = vsyncadd [#allocation7], 0
      %s36 = sshll.u32 %s1, 4
      %s37 = int_to_ptr.hbm [resolvable:$true] %s36
      %s38 = sshll.u32 [#allocation6], 4
      %s39 = int_to_ptr.vmem [resolvable:$true] %s38
      %44 = dma.hbm_to_vmem [thread:$0]  %s37, 1024, %s39, [#allocation7], 512, 512, 32
    $region9: #{tpu_custom_call.1} parent=1 // pred_fallthru
      _
    // Predicated region
    $region10: #{tpu_custom_call.1} parent=1 // pred_check
      _
    $region11: #{tpu_custom_call.1} parent=1 // pred_check_branch
      %46 = sbr.rel (0) target = $region13
    $region12: #{tpu_custom_call.1} parent=1 // pred_region
      %48 = vsyncadd [#allocation7], 0
      %s49 = sshll.u32 %s2, 4
      %s50 = int_to_ptr.hbm [resolvable:$true] %s49
      %s51 = sshll.u32 [#allocation8], 4
      %s52 = int_to_ptr.vmem [resolvable:$true] %s51
      %57 = dma.hbm_to_vmem [thread:$0]  %s50, 8192, %s52, [#allocation7], 512, 512, 32
    $region13: #{tpu_custom_call.1} parent=1 // pred_fallthru
      _
    // Predicated region
    $region14: #{tpu_custom_call.1} parent=1 // pred_check
      _
    $region15: #{tpu_custom_call.1} parent=1 // pred_check_branch
      %59 = sbr.rel (0) target = $region17
    $region16: #{tpu_custom_call.1} parent=1 // pred_region
      %61 = vsyncadd [#allocation10], 0
      %s63 = sshll.u32 %s3, 4
      %s64 = int_to_ptr.hbm [resolvable:$true] %s63
      %s65 = sshll.u32 [#allocation9], 4
      %s66 = int_to_ptr.vmem [resolvable:$true] %s65
      %68 = dma.hbm_to_vmem [thread:$0]  %s64, 64, %s66, [#allocation10]
    $region17: #{tpu_custom_call.1} parent=1 // pred_fallthru
      _
    // Predicated region
    $region18: #{tpu_custom_call.1} parent=1 // pred_check
      _
    $region19: #{tpu_custom_call.1} parent=1 // pred_check_branch
      %70 = sbr.rel (0) target = $region21
    $region20: #{tpu_custom_call.1} parent=1 // pred_region
      _
    $region21: #{tpu_custom_call.1} parent=1 // pred_fallthru
      _
    // Predicated region
    $region22: #{tpu_custom_call.1} parent=1 // pred_check
      _
    $region23: #{tpu_custom_call.1} parent=1 // pred_check_branch
      %72 = sbr.rel (0) target = $region25
    $region24: #{tpu_custom_call.1} parent=1 // pred_region
      _
    $region25: #{tpu_custom_call.1} parent=1 // pred_fallthru
      _
    // Predicated region
    $region26: #{tpu_custom_call.1} parent=1 // pred_check
      _
    $region27: #{tpu_custom_call.1} parent=1 // pred_check_branch
      %74 = sbr.rel (0) target = $region29
    $region28: #{tpu_custom_call.1} parent=1 // pred_region
      %76 = dma.done [#allocation4], 256
    $region29: #{tpu_custom_call.1} parent=1 // pred_fallthru
      _
    // Predicated region
    $region30: #{tpu_custom_call.1} parent=1 // pred_check
      _
    $region31: #{tpu_custom_call.1} parent=1 // pred_check_branch
      %78 = sbr.rel (0) target = $region33
    $region32: #{tpu_custom_call.1} parent=1 // pred_region
      %80 = dma.done [#allocation7], 1024
    $region33: #{tpu_custom_call.1} parent=1 // pred_fallthru
      _
    // Predicated region
    $region34: #{tpu_custom_call.1} parent=1 // pred_check
      _
    $region35: #{tpu_custom_call.1} parent=1 // pred_check_branch
      %82 = sbr.rel (0) target = $region37
    $region36: #{tpu_custom_call.1} parent=1 // pred_region
      %84 = dma.done [#allocation7], 8192
    $region37: #{tpu_custom_call.1} parent=1 // pred_fallthru
      _
    // Predicated region
    $region38: #{tpu_custom_call.1} parent=1 // pred_check
      _
    $region39: #{tpu_custom_call.1} parent=1 // pred_check_branch
      %86 = sbr.rel (0) target = $region41
    $region40: #{tpu_custom_call.1} parent=1 // pred_region
      %88 = dma.done [#allocation10], 64
    $region41: #{tpu_custom_call.1} parent=1 // pred_fallthru
      _
    %p89 = scmp.eq.s32.totalorder 0, 0
    // Predicated region
    $region42: #{tpu_custom_call.1} parent=1 // pred_check
      %p90 = pneg %p89
    $region43: #{tpu_custom_call.1} parent=1 // pred_check_branch
      %92 = sbr.rel (%p90) target = $region45
    $region44: #{tpu_custom_call.1} parent=1 // pred_region
      %v93 = vld [vmem:[%s4] sm:$0x3]
      %94 = vst [vmem:[#allocation12] sm:$0x3] %v93
      %v95 = vld [vmem:[%s5] sm:$0x3]
      %96 = vst [vmem:[#allocation14] sm:$0x3] %v95
    $region45: #{tpu_custom_call.1} parent=1 // pred_fallthru
      _
    %v97 = vld [vmem:[#allocation3] sm:$0xff]
    %v98 = vld [vmem:[#allocation3 + $0x8] sm:$0xff]
    %v99 = vld [vmem:[#allocation6] sm:$0xff]
    %v100 = vld [vmem:[#allocation6 + $0x8] sm:$0xff]
    %v101 = vld [vmem:[#allocation6 + $0x10] sm:$0xff]
    %v102 = vld [vmem:[#allocation6 + $0x18] sm:$0xff]
    %v103 = vld [vmem:[#allocation6 + $0x20] sm:$0xff]
    %v104 = vld [vmem:[#allocation6 + $0x28] sm:$0xff]
    %v105 = vld [vmem:[#allocation6 + $0x30] sm:$0xff]
    %v106 = vld [vmem:[#allocation6 + $0x38] sm:$0xff]
    %v107 = vld [vmem:[#allocation9] sm:$0xf]
    %v109 = vperm.slane %v107, 0
    %v110 = vperm.slane %v107, 1
    %v111 = vperm.slane %v107, 2
    %v112 = vperm.slane %v107, 3
    %vm117 = vcmask 130048
    %v119 = vsel %vm117, %v97, 0
    %v122 = vsel %vm117, %v98, 0
    %124 = vmatpush.msra.mxu0 0.0
    %125 = vmatpush.msra.mxu0 0.0
    %126 = vmatpush.msra.mxu0 0.0
    %127 = vmatpush.msra.mxu0 0.0
    %128 = vmatpush.msra.mxu0 0.0
    %129 = vmatpush.msra.mxu0 0.0
    %130 = vmatpush.msra.mxu0 0.0
    %131 = vmatpush.msra.mxu0 0.0
    %132 = vmatpush.msra.mxu0 0.0
    %133 = vmatpush.msra.mxu0 0.0
    %134 = vmatpush.msra.mxu0 0.0
    %135 = vmatpush.msra.mxu0 0.0
    %136 = vmatpush.msra.mxu0 0.0
    %137 = vmatpush.msra.mxu0 0.0
    %138 = vmatpush.msra.mxu0 %v103
    %139 = vmatpush.msra.mxu0 %v99
    %140 = vmatmul.f32.gmra.mxu0 %v119
    %v141 = vpop.f32.mrf.mxu0
    %v142 = vadd.f32 %v109, %v141
    %143 = vmatmul.f32.gmra.mxu0 %v122
    %v144 = vpop.f32.mrf.mxu0
    %v145 = vadd.f32 %v109, %v144
    %146 = vdwg.mxu0
    %147 = vmatpush.msra.mxu0 0.0
    %148 = vmatpush.msra.mxu0 0.0
    %149 = vmatpush.msra.mxu0 0.0
    %150 = vmatpush.msra.mxu0 0.0
    %151 = vmatpush.msra.mxu0 0.0
    %152 = vmatpush.msra.mxu0 0.0
    %153 = vmatpush.msra.mxu0 0.0
    %154 = vmatpush.msra.mxu0 0.0
    %155 = vmatpush.msra.mxu0 0.0
    %156 = vmatpush.msra.mxu0 0.0
    %157 = vmatpush.msra.mxu0 0.0
    %158 = vmatpush.msra.mxu0 0.0
    %159 = vmatpush.msra.mxu0 0.0
    %160 = vmatpush.msra.mxu0 0.0
    %161 = vmatpush.msra.mxu0 %v104
    %162 = vmatpush.msra.mxu0 %v100
    %163 = vmatmul.f32.gmra.mxu0 %v119
    %v164 = vpop.f32.mrf.mxu0
    %v165 = vadd.f32 %v110, %v164
    %166 = vmatmul.f32.gmra.mxu0 %v122
    %v167 = vpop.f32.mrf.mxu0
    %v168 = vadd.f32 %v110, %v167
    %169 = vdwg.mxu0
    %170 = vmatpush.msra.mxu0 0.0
    %171 = vmatpush.msra.mxu0 0.0
    %172 = vmatpush.msra.mxu0 0.0
    %173 = vmatpush.msra.mxu0 0.0
    %174 = vmatpush.msra.mxu0 0.0
    %175 = vmatpush.msra.mxu0 0.0
    %176 = vmatpush.msra.mxu0 0.0
    %177 = vmatpush.msra.mxu0 0.0
    %178 = vmatpush.msra.mxu0 0.0
    %179 = vmatpush.msra.mxu0 0.0
    %180 = vmatpush.msra.mxu0 0.0
    %181 = vmatpush.msra.mxu0 0.0
    %182 = vmatpush.msra.mxu0 0.0
    %183 = vmatpush.msra.mxu0 0.0
    %184 = vmatpush.msra.mxu0 %v105
    %185 = vmatpush.msra.mxu0 %v101
    %186 = vmatmul.f32.gmra.mxu0 %v119
    %v187 = vpop.f32.mrf.mxu0
    %v188 = vadd.f32 %v111, %v187
    %189 = vmatmul.f32.gmra.mxu0 %v122
    %v190 = vpop.f32.mrf.mxu0
    %v191 = vadd.f32 %v111, %v190
    %192 = vdwg.mxu0
    %193 = vmatpush.msra.mxu0 0.0
    %194 = vmatpush.msra.mxu0 0.0
    %195 = vmatpush.msra.mxu0 0.0
    %196 = vmatpush.msra.mxu0 0.0
    %197 = vmatpush.msra.mxu0 0.0
    %198 = vmatpush.msra.mxu0 0.0
    %199 = vmatpush.msra.mxu0 0.0
    %200 = vmatpush.msra.mxu0 0.0
    %201 = vmatpush.msra.mxu0 0.0
    %202 = vmatpush.msra.mxu0 0.0
    %203 = vmatpush.msra.mxu0 0.0
    %204 = vmatpush.msra.mxu0 0.0
    %205 = vmatpush.msra.mxu0 0.0
    %206 = vmatpush.msra.mxu0 0.0
    %207 = vmatpush.msra.mxu0 %v106
    %208 = vmatpush.msra.mxu0 %v102
    %209 = vmatmul.f32.gmra.mxu0 %v119
    %v210 = vpop.f32.mrf.mxu0
    %v211 = vadd.f32 %v112, %v210
    %212 = vmatmul.f32.gmra.mxu0 %v122
    %v213 = vpop.f32.mrf.mxu0
    %v214 = vadd.f32 %v112, %v213
    %215 = vdwg.mxu0
    %216 = vst [vmem:[#allocation2] sm:$0xff] %v142
    %217 = vst [vmem:[#allocation2 + $0x8] sm:$0xff] %v165
    %218 = vst [vmem:[#allocation2 + $0x10] sm:$0xff] %v188
    %219 = vst [vmem:[#allocation2 + $0x18] sm:$0xff] %v211
    %220 = vst [vmem:[#allocation2 + $0x20] sm:$0xff] %v145
    %221 = vst [vmem:[#allocation2 + $0x28] sm:$0xff] %v168
    %222 = vst [vmem:[#allocation2 + $0x30] sm:$0xff] %v191
    %223 = vst [vmem:[#allocation2 + $0x38] sm:$0xff] %v214
    %v224 = vld [vmem:[#allocation8] sm:$0xff]
    %v225 = vld [vmem:[#allocation8 + $0x8] sm:$0xff]
    %v226 = vld [vmem:[#allocation8 + $0x10] sm:$0xff]
    %v227 = vld [vmem:[#allocation8 + $0x18] sm:$0xff]
    %v228 = vld [vmem:[#allocation8 + $0x20] sm:$0xff]
    %v229 = vld [vmem:[#allocation8 + $0x28] sm:$0xff]
    %v230 = vld [vmem:[#allocation8 + $0x30] sm:$0xff]
    %v231 = vld [vmem:[#allocation8 + $0x38] sm:$0xff]
    %v232 = vld [vmem:[#allocation8 + $0x40] sm:$0xff]
    %v233 = vld [vmem:[#allocation8 + $0x48] sm:$0xff]
    %v234 = vld [vmem:[#allocation8 + $0x50] sm:$0xff]
    %v235 = vld [vmem:[#allocation8 + $0x58] sm:$0xff]
    %v236 = vld [vmem:[#allocation8 + $0x60] sm:$0xff]
    %v237 = vld [vmem:[#allocation8 + $0x68] sm:$0xff]
    %v238 = vld [vmem:[#allocation8 + $0x70] sm:$0xff]
    %v239 = vld [vmem:[#allocation8 + $0x78] sm:$0xff]
    %v240 = vld [vmem:[#allocation8 + $0x80] sm:$0xff]
    %v241 = vld [vmem:[#allocation8 + $0x88] sm:$0xff]
    %v242 = vld [vmem:[#allocation8 + $0x90] sm:$0xff]
    %v243 = vld [vmem:[#allocation8 + $0x98] sm:$0xff]
    %v244 = vld [vmem:[#allocation8 + $0xa0] sm:$0xff]
    %v245 = vld [vmem:[#allocation8 + $0xa8] sm:$0xff]
    %v246 = vld [vmem:[#allocation8 + $0xb0] sm:$0xff]
    %v247 = vld [vmem:[#allocation8 + $0xb8] sm:$0xff]
    %v248 = vld [vmem:[#allocation8 + $0xc0] sm:$0xff]
    %v249 = vld [vmem:[#allocation8 + $0xc8] sm:$0xff]
    %v250 = vld [vmem:[#allocation8 + $0xd0] sm:$0xff]
    %v251 = vld [vmem:[#allocation8 + $0xd8] sm:$0xff]
    %v252 = vld [vmem:[#allocation8 + $0xe0] sm:$0xff]
    %v253 = vld [vmem:[#allocation8 + $0xe8] sm:$0xff]
    %v254 = vld [vmem:[#allocation8 + $0xf0] sm:$0xff]
    %v255 = vld [vmem:[#allocation8 + $0xf8] sm:$0xff]
    %v256 = vld [vmem:[#allocation8 + $0x100] sm:$0xff]
    %v257 = vld [vmem:[#allocation8 + $0x108] sm:$0xff]
    %v258 = vld [vmem:[#allocation8 + $0x110] sm:$0xff]
    %v259 = vld [vmem:[#allocation8 + $0x118] sm:$0xff]
    %v260 = vld [vmem:[#allocation8 + $0x120] sm:$0xff]
    %v261 = vld [vmem:[#allocation8 + $0x128] sm:$0xff]
    %v262 = vld [vmem:[#allocation8 + $0x130] sm:$0xff]
    %v263 = vld [vmem:[#allocation8 + $0x138] sm:$0xff]
    %v264 = vld [vmem:[#allocation8 + $0x140] sm:$0xff]
    %v265 = vld [vmem:[#allocation8 + $0x148] sm:$0xff]
    %v266 = vld [vmem:[#allocation8 + $0x150] sm:$0xff]
    %v267 = vld [vmem:[#allocation8 + $0x158] sm:$0xff]
    %v268 = vld [vmem:[#allocation8 + $0x160] sm:$0xff]
    %v269 = vld [vmem:[#allocation8 + $0x168] sm:$0xff]
    %v270 = vld [vmem:[#allocation8 + $0x170] sm:$0xff]
    %v271 = vld [vmem:[#allocation8 + $0x178] sm:$0xff]
    %v272 = vld [vmem:[#allocation8 + $0x180] sm:$0xff]
    %v273 = vld [vmem:[#allocation8 + $0x188] sm:$0xff]
    %v274 = vld [vmem:[#allocation8 + $0x190] sm:$0xff]
    %v275 = vld [vmem:[#allocation8 + $0x198] sm:$0xff]
    %v276 = vld [vmem:[#allocation8 + $0x1a0] sm:$0xff]
    %v277 = vld [vmem:[#allocation8 + $0x1a8] sm:$0xff]
    %v278 = vld [vmem:[#allocation8 + $0x1b0] sm:$0xff]
    %v279 = vld [vmem:[#allocation8 + $0x1b8] sm:$0xff]
    %v280 = vld [vmem:[#allocation8 + $0x1c0] sm:$0xff]
    %v281 = vld [vmem:[#allocation8 + $0x1c8] sm:$0xff]
    %v282 = vld [vmem:[#allocation8 + $0x1d0] sm:$0xff]
    %v283 = vld [vmem:[#allocation8 + $0x1d8] sm:$0xff]
    %v284 = vld [vmem:[#allocation8 + $0x1e0] sm:$0xff]
    %v285 = vld [vmem:[#allocation8 + $0x1e8] sm:$0xff]
    %v286 = vld [vmem:[#allocation8 + $0x1f0] sm:$0xff]
    %v287 = vld [vmem:[#allocation8 + $0x1f8] sm:$0xff]
    %v288 = vld [vmem:[#allocation12] sm:$0x3]
    %v289 = vld [vmem:[#allocation14] sm:$0x3]
    %v290 = vld [vmem:[#allocation2] sm:$0x3]
    %v291 = vld [vmem:[#allocation2 + $0x8] sm:$0x3]
    %v292 = vld [vmem:[#allocation2 + $0x10] sm:$0x3]
    %v293 = vld [vmem:[#allocation2 + $0x18] sm:$0x3]
    %294 = vmatpush.msra.mxu0 %v284
    %295 = vmatpush.msra.mxu0 %v280
    %296 = vmatpush.msra.mxu0 %v276
    %297 = vmatpush.msra.mxu0 %v272
    %298 = vmatpush.msra.mxu0 %v268
    %299 = vmatpush.msra.mxu0 %v264
    %300 = vmatpush.msra.mxu0 %v260
    %301 = vmatpush.msra.mxu0 %v256
    %302 = vmatpush.msra.mxu0 %v252
    %303 = vmatpush.msra.mxu0 %v248
    %304 = vmatpush.msra.mxu0 %v244
    %305 = vmatpush.msra.mxu0 %v240
    %306 = vmatpush.msra.mxu0 %v236
    %307 = vmatpush.msra.mxu0 %v232
    %308 = vmatpush.msra.mxu0 %v228
    %309 = vmatpush.msra.mxu0 %v224
    %310 = vmatmul.f32.gmra.mxu0 %v288
    %v311 = vpop.f32.mrf.mxu0
    %v312 = vadd.f32 0.0, %v311
    %313 = vdwg.mxu0
    %314 = vmatpush.msra.mxu0 %v285
    %315 = vmatpush.msra.mxu0 %v281
    %316 = vmatpush.msra.mxu0 %v277
    %317 = vmatpush.msra.mxu0 %v273
    %318 = vmatpush.msra.mxu0 %v269
    %319 = vmatpush.msra.mxu0 %v265
    %320 = vmatpush.msra.mxu0 %v261
    %321 = vmatpush.msra.mxu0 %v257
    %322 = vmatpush.msra.mxu0 %v253
    %323 = vmatpush.msra.mxu0 %v249
    %324 = vmatpush.msra.mxu0 %v245
    %325 = vmatpush.msra.mxu0 %v241
    %326 = vmatpush.msra.mxu0 %v237
    %327 = vmatpush.msra.mxu0 %v233
    %328 = vmatpush.msra.mxu0 %v229
    %329 = vmatpush.msra.mxu0 %v225
    %330 = vmatmul.f32.gmra.mxu0 %v288
    %v331 = vpop.f32.mrf.mxu0
    %v332 = vadd.f32 0.0, %v331
    %333 = vdwg.mxu0
    %334 = vmatpush.msra.mxu0 %v286
    %335 = vmatpush.msra.mxu0 %v282
    %336 = vmatpush.msra.mxu0 %v278
    %337 = vmatpush.msra.mxu0 %v274
    %338 = vmatpush.msra.mxu0 %v270
    %339 = vmatpush.msra.mxu0 %v266
    %340 = vmatpush.msra.mxu0 %v262
    %341 = vmatpush.msra.mxu0 %v258
    %342 = vmatpush.msra.mxu0 %v254
    %343 = vmatpush.msra.mxu0 %v250
    %344 = vmatpush.msra.mxu0 %v246
    %345 = vmatpush.msra.mxu0 %v242
    %346 = vmatpush.msra.mxu0 %v238
    %347 = vmatpush.msra.mxu0 %v234
    %348 = vmatpush.msra.mxu0 %v230
    %349 = vmatpush.msra.mxu0 %v226
    %350 = vmatmul.f32.gmra.mxu0 %v288
    %v351 = vpop.f32.mrf.mxu0
    %v352 = vadd.f32 0.0, %v351
    %353 = vdwg.mxu0
    %354 = vmatpush.msra.mxu0 %v287
    %355 = vmatpush.msra.mxu0 %v283
    %356 = vmatpush.msra.mxu0 %v279
    %357 = vmatpush.msra.mxu0 %v275
    %358 = vmatpush.msra.mxu0 %v271
    %359 = vmatpush.msra.mxu0 %v267
    %360 = vmatpush.msra.mxu0 %v263
    %361 = vmatpush.msra.mxu0 %v259
    %362 = vmatpush.msra.mxu0 %v255
    %363 = vmatpush.msra.mxu0 %v251
    %364 = vmatpush.msra.mxu0 %v247
    %365 = vmatpush.msra.mxu0 %v243
    %366 = vmatpush.msra.mxu0 %v239
    %367 = vmatpush.msra.mxu0 %v235
    %368 = vmatpush.msra.mxu0 %v231
    %369 = vmatpush.msra.mxu0 %v227
    %370 = vmatmul.f32.gmra.mxu0 %v288
    %v371 = vpop.f32.mrf.mxu0
    %v372 = vadd.f32 0.0, %v371
    %373 = vdwg.mxu0
    %v374 = vadd.f32 %v290, %v312
    %v375 = vadd.f32 %v291, %v332
    %v376 = vadd.f32 %v292, %v352
    %v377 = vadd.f32 %v293, %v372
    %v378 = vxor.u32 %v374, 2147483648
    %v379 = vxor.u32 %v375, 2147483648
    %v380 = vxor.u32 %v376, 2147483648
    %v381 = vmul.f32 %v378, 1.442695
    %v382 = vpow.pop %v381
    %v383 = vmul.f32 %v379, 1.442695
    %v384 = vpow.pop %v383
    %v385 = vmul.f32 %v380, 1.442695
    %v386 = vpow.pop %v385
    %v387 = vadd.f32 %v382, 1.0
    %v388 = vadd.f32 %v384, 1.0
    %v389 = vadd.f32 %v386, 1.0
    %v390 = vrcp.pop %v387
    %v391 = vmul.f32 %v387, %v390
    %v392 = vsub.f32 1.0, %v391
    %v393 = vmul.f32 %v390, %v392
    %v394 = vadd.f32 %v390, %v393
    %vm395 = vweird.f32 %v387
    %vm396 = vweird.f32 %v390
    %vm397 = vmor %vm395, %vm396
    %v398 = vsel %vm397, %v390, %v394
    %v399 = vand.u32 2147483647, %v387
    %vm400 = vcmp.eq.f32.partialorder %v399, 8.507059e+37
    %v401 = vand.u32 %v387, 2147483648
    %v402 = vor.u32 1.1754944e-38, %v401
    %v403 = vsel %vm400, %v402, %v398
    %v404 = vmul.f32 1.0, %v403
    %v405 = vrcp.pop %v388
    %v406 = vmul.f32 %v388, %v405
    %v407 = vsub.f32 1.0, %v406
    %v408 = vmul.f32 %v405, %v407
    %v409 = vadd.f32 %v405, %v408
    %vm410 = vweird.f32 %v388
    %vm411 = vweird.f32 %v405
    %vm412 = vmor %vm410, %vm411
    %v413 = vsel %vm412, %v405, %v409
    %v414 = vand.u32 2147483647, %v388
    %vm415 = vcmp.eq.f32.partialorder %v414, 8.507059e+37
    %v416 = vand.u32 %v388, 2147483648
    %v417 = vor.u32 1.1754944e-38, %v416
    %v418 = vsel %vm415, %v417, %v413
    %v419 = vmul.f32 1.0, %v418
    %v420 = vrcp.pop %v389
    %v421 = vmul.f32 %v389, %v420
    %v422 = vsub.f32 1.0, %v421
    %v423 = vmul.f32 %v420, %v422
    %v424 = vadd.f32 %v420, %v423
    %vm425 = vweird.f32 %v389
    %vm426 = vweird.f32 %v420
    %vm427 = vmor %vm425, %vm426
    %v428 = vsel %vm427, %v420, %v424
    %v429 = vand.u32 2147483647, %v389
    %vm430 = vcmp.eq.f32.partialorder %v429, 8.507059e+37
    %v431 = vand.u32 %v389, 2147483648
    %v432 = vor.u32 1.1754944e-38, %v431
    %v433 = vsel %vm430, %v432, %v428
    %v434 = vmul.f32 1.0, %v433
    %v435 = vtanh.pop %v377
    %v436 = vmul.f32 %v419, %v289
    %v437 = vmul.f32 %v404, %v435
    %v438 = vadd.f32 %v436, %v437
    %v439 = vtanh.pop %v438
    %v440 = vmul.f32 %v434, %v439
    %v442 = vrot.slane %v440, 1
    %444 = vst [vmem:[#allocation11] sm:$0x1] %v440
    %445 = vst [vmem:[#allocation11 + $0x8] sm:$0x1] %v442
    %v446 = vld [vmem:[#allocation2] sm:$0xc]
    %v447 = vld [vmem:[#allocation2 + $0x8] sm:$0xc]
    %v448 = vld [vmem:[#allocation2 + $0x10] sm:$0xc]
    %v449 = vld [vmem:[#allocation2 + $0x18] sm:$0xc]
    %450 = vmatpush.msra.mxu0 %v284
    %451 = vmatpush.msra.mxu0 %v280
    %452 = vmatpush.msra.mxu0 %v276
    %453 = vmatpush.msra.mxu0 %v272
    %454 = vmatpush.msra.mxu0 %v268
    %455 = vmatpush.msra.mxu0 %v264
    %456 = vmatpush.msra.mxu0 %v260
    %457 = vmatpush.msra.mxu0 %v256
    %458 = vmatpush.msra.mxu0 %v252
    %459 = vmatpush.msra.mxu0 %v248
    %460 = vmatpush.msra.mxu0 %v244
    %461 = vmatpush.msra.mxu0 %v240
    %462 = vmatpush.msra.mxu0 %v236
    %463 = vmatpush.msra.mxu0 %v232
    %464 = vmatpush.msra.mxu0 %v228
    %465 = vmatpush.msra.mxu0 %v224
    %466 = vmatmul.f32.gmra.mxu0 %v440
    %v467 = vpop.f32.mrf.mxu0
    %v468 = vadd.f32 0.0, %v467
    %469 = vdwg.mxu0
    %470 = vmatpush.msra.mxu0 %v285
    %471 = vmatpush.msra.mxu0 %v281
    %472 = vmatpush.msra.mxu0 %v277
    %473 = vmatpush.msra.mxu0 %v273
    %474 = vmatpush.msra.mxu0 %v269
    %475 = vmatpush.msra.mxu0 %v265
    %476 = vmatpush.msra.mxu0 %v261
    %477 = vmatpush.msra.mxu0 %v257
    %478 = vmatpush.msra.mxu0 %v253
    %479 = vmatpush.msra.mxu0 %v249
    %480 = vmatpush.msra.mxu0 %v245
    %481 = vmatpush.msra.mxu0 %v241
    %482 = vmatpush.msra.mxu0 %v237
    %483 = vmatpush.msra.mxu0 %v233
    %484 = vmatpush.msra.mxu0 %v229
    %485 = vmatpush.msra.mxu0 %v225
    %486 = vmatmul.f32.gmra.mxu0 %v440
    %v487 = vpop.f32.mrf.mxu0
    %v488 = vadd.f32 0.0, %v487
    %489 = vdwg.mxu0
    %490 = vmatpush.msra.mxu0 %v286
    %491 = vmatpush.msra.mxu0 %v282
    %492 = vmatpush.msra.mxu0 %v278
    %493 = vmatpush.msra.mxu0 %v274
    %494 = vmatpush.msra.mxu0 %v270
    %495 = vmatpush.msra.mxu0 %v266
    %496 = vmatpush.msra.mxu0 %v262
    %497 = vmatpush.msra.mxu0 %v258
    %498 = vmatpush.msra.mxu0 %v254
    %499 = vmatpush.msra.mxu0 %v250
    %500 = vmatpush.msra.mxu0 %v246
    %501 = vmatpush.msra.mxu0 %v242
    %502 = vmatpush.msra.mxu0 %v238
    %503 = vmatpush.msra.mxu0 %v234
    %504 = vmatpush.msra.mxu0 %v230
    %505 = vmatpush.msra.mxu0 %v226
    %506 = vmatmul.f32.gmra.mxu0 %v440
    %v507 = vpop.f32.mrf.mxu0
    %v508 = vadd.f32 0.0, %v507
    %509 = vdwg.mxu0
    %510 = vmatpush.msra.mxu0 %v287
    %511 = vmatpush.msra.mxu0 %v283
    %512 = vmatpush.msra.mxu0 %v279
    %513 = vmatpush.msra.mxu0 %v275
    %514 = vmatpush.msra.mxu0 %v271
    %515 = vmatpush.msra.mxu0 %v267
    %516 = vmatpush.msra.mxu0 %v263
    %517 = vmatpush.msra.mxu0 %v259
    %518 = vmatpush.msra.mxu0 %v255
    %519 = vmatpush.msra.mxu0 %v251
    %520 = vmatpush.msra.mxu0 %v247
    %521 = vmatpush.msra.mxu0 %v243
    %522 = vmatpush.msra.mxu0 %v239
    %523 = vmatpush.msra.mxu0 %v235
    %524 = vmatpush.msra.mxu0 %v231
    %525 = vmatpush.msra.mxu0 %v227
    %526 = vmatmul.f32.gmra.mxu0 %v440
    %v527 = vpop.f32.mrf.mxu0
    %v528 = vadd.f32 0.0, %v527
    %529 = vdwg.mxu0
    %v534 = vrot.slane %v468, 6
    %v535 = vrot.slane %v488, 6
    %v536 = vrot.slane %v508, 6
    %v537 = vrot.slane %v528, 6
    %v542 = vadd.f32 %v446, %v534
    %v543 = vadd.f32 %v447, %v535
    %v544 = vadd.f32 %v448, %v536
    %v545 = vadd.f32 %v449, %v537
    %v546 = vxor.u32 %v542, 2147483648
    %v547 = vxor.u32 %v543, 2147483648
    %v548 = vxor.u32 %v544, 2147483648
    %v549 = vmul.f32 %v546, 1.442695
    %v550 = vpow.pop %v549
    %v551 = vmul.f32 %v547, 1.442695
    %v552 = vpow.pop %v551
    %v553 = vmul.f32 %v548, 1.442695
    %v554 = vpow.pop %v553
    %v555 = vadd.f32 %v550, 1.0
    %v556 = vadd.f32 %v552, 1.0
    %v557 = vadd.f32 %v554, 1.0
    %v558 = vrcp.pop %v555
    %v559 = vmul.f32 %v555, %v558
    %v560 = vsub.f32 1.0, %v559
    %v561 = vmul.f32 %v558, %v560
    %v562 = vadd.f32 %v558, %v561
    %vm563 = vweird.f32 %v555
    %vm564 = vweird.f32 %v558
    %vm565 = vmor %vm563, %vm564
    %v566 = vsel %vm565, %v558, %v562
    %v567 = vand.u32 2147483647, %v555
    %vm568 = vcmp.eq.f32.partialorder %v567, 8.507059e+37
    %v569 = vand.u32 %v555, 2147483648
    %v570 = vor.u32 1.1754944e-38, %v569
    %v571 = vsel %vm568, %v570, %v566
    %v572 = vmul.f32 1.0, %v571
    %v573 = vrcp.pop %v556
    %v574 = vmul.f32 %v556, %v573
    %v575 = vsub.f32 1.0, %v574
    %v576 = vmul.f32 %v573, %v575
    %v577 = vadd.f32 %v573, %v576
    %vm578 = vweird.f32 %v556
    %vm579 = vweird.f32 %v573
    %vm580 = vmor %vm578, %vm579
    %v581 = vsel %vm580, %v573, %v577
    %v582 = vand.u32 2147483647, %v556
    %vm583 = vcmp.eq.f32.partialorder %v582, 8.507059e+37
    %v584 = vand.u32 %v556, 2147483648
    %v585 = vor.u32 1.1754944e-38, %v584
    %v586 = vsel %vm583, %v585, %v581
    %v587 = vmul.f32 1.0, %v586
    %v588 = vrcp.pop %v557
    %v589 = vmul.f32 %v557, %v588
    %v590 = vsub.f32 1.0, %v589
    %v591 = vmul.f32 %v588, %v590
    %v592 = vadd.f32 %v588, %v591
    %vm593 = vweird.f32 %v557
    %vm594 = vweird.f32 %v588
    %vm595 = vmor %vm593, %vm594
    %v596 = vsel %vm595, %v588, %v592
    %v597 = vand.u32 2147483647, %v557
    %vm598 = vcmp.eq.f32.partialorder %v597, 8.507059e+37
    %v599 = vand.u32 %v557, 2147483648
    %v600 = vor.u32 1.1754944e-38, %v599
    %v601 = vsel %vm598, %v600, %v596
    %v602 = vmul.f32 1.0, %v601
    %v603 = vtanh.pop %v545
    %v605 = vrot.slane %v438, 6
    %v607 = vmul.f32 %v587, %v605
    %v608 = vmul.f32 %v572, %v603
    %v609 = vadd.f32 %v607, %v608
    %v610 = vtanh.pop %v609
    %v611 = vmul.f32 %v602, %v610
    %613 = vst [vmem:[#allocation1] sm:$0xff] %v611
    %s614 = scalar_lea.vmem [#allocation1], 2
    %v615 = vld [vmem:[%s614] ss:$9 sm:$0xff]
    %s616 = scalar_lea.vmem [#allocation1], 3
    %v617 = vld [vmem:[%s616] ss:$9 sm:$0xff]
    %620 = vst [vmem:[#allocation11 + $0x1] sm:$0x1] %v615
    %621 = vst [vmem:[#allocation11 + $0x9] sm:$0x1] %v617
    %v622 = vld [vmem:[#allocation2] sm:$0x30]
    %v623 = vld [vmem:[#allocation2 + $0x8] sm:$0x30]
    %v624 = vld [vmem:[#allocation2 + $0x10] sm:$0x30]
    %v625 = vld [vmem:[#allocation2 + $0x18] sm:$0x30]
    %v626 = vrot.slane %v611, 2
    %628 = vmatpush.msra.mxu0 %v284
    %629 = vmatpush.msra.mxu0 %v280
    %630 = vmatpush.msra.mxu0 %v276
    %631 = vmatpush.msra.mxu0 %v272
    %632 = vmatpush.msra.mxu0 %v268
    %633 = vmatpush.msra.mxu0 %v264
    %634 = vmatpush.msra.mxu0 %v260
    %635 = vmatpush.msra.mxu0 %v256
    %636 = vmatpush.msra.mxu0 %v252
    %637 = vmatpush.msra.mxu0 %v248
    %638 = vmatpush.msra.mxu0 %v244
    %639 = vmatpush.msra.mxu0 %v240
    %640 = vmatpush.msra.mxu0 %v236
    %641 = vmatpush.msra.mxu0 %v232
    %642 = vmatpush.msra.mxu0 %v228
    %643 = vmatpush.msra.mxu0 %v224
    %644 = vmatmul.f32.gmra.mxu0 %v626
    %v645 = vpop.f32.mrf.mxu0
    %v646 = vadd.f32 0.0, %v645
    %647 = vdwg.mxu0
    %648 = vmatpush.msra.mxu0 %v285
    %649 = vmatpush.msra.mxu0 %v281
    %650 = vmatpush.msra.mxu0 %v277
    %651 = vmatpush.msra.mxu0 %v273
    %652 = vmatpush.msra.mxu0 %v269
    %653 = vmatpush.msra.mxu0 %v265
    %654 = vmatpush.msra.mxu0 %v261
    %655 = vmatpush.msra.mxu0 %v257
    %656 = vmatpush.msra.mxu0 %v253
    %657 = vmatpush.msra.mxu0 %v249
    %658 = vmatpush.msra.mxu0 %v245
    %659 = vmatpush.msra.mxu0 %v241
    %660 = vmatpush.msra.mxu0 %v237
    %661 = vmatpush.msra.mxu0 %v233
    %662 = vmatpush.msra.mxu0 %v229
    %663 = vmatpush.msra.mxu0 %v225
    %664 = vmatmul.f32.gmra.mxu0 %v626
    %v665 = vpop.f32.mrf.mxu0
    %v666 = vadd.f32 0.0, %v665
    %667 = vdwg.mxu0
    %668 = vmatpush.msra.mxu0 %v286
    %669 = vmatpush.msra.mxu0 %v282
    %670 = vmatpush.msra.mxu0 %v278
    %671 = vmatpush.msra.mxu0 %v274
    %672 = vmatpush.msra.mxu0 %v270
    %673 = vmatpush.msra.mxu0 %v266
    %674 = vmatpush.msra.mxu0 %v262
    %675 = vmatpush.msra.mxu0 %v258
    %676 = vmatpush.msra.mxu0 %v254
    %677 = vmatpush.msra.mxu0 %v250
    %678 = vmatpush.msra.mxu0 %v246
    %679 = vmatpush.msra.mxu0 %v242
    %680 = vmatpush.msra.mxu0 %v238
    %681 = vmatpush.msra.mxu0 %v234
    %682 = vmatpush.msra.mxu0 %v230
    %683 = vmatpush.msra.mxu0 %v226
    %684 = vmatmul.f32.gmra.mxu0 %v626
    %v685 = vpop.f32.mrf.mxu0
    %v686 = vadd.f32 0.0, %v685
    %687 = vdwg.mxu0
    %688 = vmatpush.msra.mxu0 %v287
    %689 = vmatpush.msra.mxu0 %v283
    %690 = vmatpush.msra.mxu0 %v279
    %691 = vmatpush.msra.mxu0 %v275
    %692 = vmatpush.msra.mxu0 %v271
    %693 = vmatpush.msra.mxu0 %v267
    %694 = vmatpush.msra.mxu0 %v263
    %695 = vmatpush.msra.mxu0 %v259
    %696 = vmatpush.msra.mxu0 %v255
    %697 = vmatpush.msra.mxu0 %v251
    %698 = vmatpush.msra.mxu0 %v247
    %699 = vmatpush.msra.mxu0 %v243
    %700 = vmatpush.msra.mxu0 %v239
    %701 = vmatpush.msra.mxu0 %v235
    %702 = vmatpush.msra.mxu0 %v231
    %703 = vmatpush.msra.mxu0 %v227
    %704 = vmatmul.f32.gmra.mxu0 %v626
    %v705 = vpop.f32.mrf.mxu0
    %v706 = vadd.f32 0.0, %v705
    %707 = vdwg.mxu0
    %v712 = vrot.slane %v646, 4
    %v713 = vrot.slane %v666, 4
    %v714 = vrot.slane %v686, 4
    %v715 = vrot.slane %v706, 4
    %v720 = vadd.f32 %v622, %v712
    %v721 = vadd.f32 %v623, %v713
    %v722 = vadd.f32 %v624, %v714
    %v723 = vadd.f32 %v625, %v715
    %v724 = vxor.u32 %v720, 2147483648
    %v725 = vxor.u32 %v721, 2147483648
    %v726 = vxor.u32 %v722, 2147483648
    %v727 = vmul.f32 %v724, 1.442695
    %v728 = vpow.pop %v727
    %v729 = vmul.f32 %v725, 1.442695
    %v730 = vpow.pop %v729
    %v731 = vmul.f32 %v726, 1.442695
    %v732 = vpow.pop %v731
    %v733 = vadd.f32 %v728, 1.0
    %v734 = vadd.f32 %v730, 1.0
    %v735 = vadd.f32 %v732, 1.0
    %v736 = vrcp.pop %v733
    %v737 = vmul.f32 %v733, %v736
    %v738 = vsub.f32 1.0, %v737
    %v739 = vmul.f32 %v736, %v738
    %v740 = vadd.f32 %v736, %v739
    %vm741 = vweird.f32 %v733
    %vm742 = vweird.f32 %v736
    %vm743 = vmor %vm741, %vm742
    %v744 = vsel %vm743, %v736, %v740
    %v745 = vand.u32 2147483647, %v733
    %vm746 = vcmp.eq.f32.partialorder %v745, 8.507059e+37
    %v747 = vand.u32 %v733, 2147483648
    %v748 = vor.u32 1.1754944e-38, %v747
    %v749 = vsel %vm746, %v748, %v744
    %v750 = vmul.f32 1.0, %v749
    %v751 = vrcp.pop %v734
    %v752 = vmul.f32 %v734, %v751
    %v753 = vsub.f32 1.0, %v752
    %v754 = vmul.f32 %v751, %v753
    %v755 = vadd.f32 %v751, %v754
    %vm756 = vweird.f32 %v734
    %vm757 = vweird.f32 %v751
    %vm758 = vmor %vm756, %vm757
    %v759 = vsel %vm758, %v751, %v755
    %v760 = vand.u32 2147483647, %v734
    %vm761 = vcmp.eq.f32.partialorder %v760, 8.507059e+37
    %v762 = vand.u32 %v734, 2147483648
    %v763 = vor.u32 1.1754944e-38, %v762
    %v764 = vsel %vm761, %v763, %v759
    %v765 = vmul.f32 1.0, %v764
    %v766 = vrcp.pop %v735
    %v767 = vmul.f32 %v735, %v766
    %v768 = vsub.f32 1.0, %v767
    %v769 = vmul.f32 %v766, %v768
    %v770 = vadd.f32 %v766, %v769
    %vm771 = vweird.f32 %v735
    %vm772 = vweird.f32 %v766
    %vm773 = vmor %vm771, %vm772
    %v774 = vsel %vm773, %v766, %v770
    %v775 = vand.u32 2147483647, %v735
    %vm776 = vcmp.eq.f32.partialorder %v775, 8.507059e+37
    %v777 = vand.u32 %v735, 2147483648
    %v778 = vor.u32 1.1754944e-38, %v777
    %v779 = vsel %vm776, %v778, %v774
    %v780 = vmul.f32 1.0, %v779
    %v781 = vtanh.pop %v723
    %v783 = vrot.slane %v609, 6
    %v785 = vmul.f32 %v765, %v783
    %v786 = vmul.f32 %v750, %v781
    %v787 = vadd.f32 %v785, %v786
    %v788 = vtanh.pop %v787
    %v789 = vmul.f32 %v780, %v788
    %791 = vst [vmem:[#allocation1] sm:$0xff] %v789
    %s792 = scalar_lea.vmem [#allocation1], 4
    %v793 = vld [vmem:[%s792] ss:$9 sm:$0xff]
    %s794 = scalar_lea.vmem [#allocation1], 5
    %v795 = vld [vmem:[%s794] ss:$9 sm:$0xff]
    %798 = vst [vmem:[#allocation11 + $0x2] sm:$0x1] %v793
    %799 = vst [vmem:[#allocation11 + $0xa] sm:$0x1] %v795
    %v800 = vld [vmem:[#allocation2] sm:$0xc0]
    %v801 = vld [vmem:[#allocation2 + $0x8] sm:$0xc0]
    %v802 = vld [vmem:[#allocation2 + $0x10] sm:$0xc0]
    %v803 = vld [vmem:[#allocation2 + $0x18] sm:$0xc0]
    %v804 = vrot.slane %v789, 4
    %806 = vmatpush.msra.mxu0 %v284
    %807 = vmatpush.msra.mxu0 %v280
    %808 = vmatpush.msra.mxu0 %v276
    %809 = vmatpush.msra.mxu0 %v272
    %810 = vmatpush.msra.mxu0 %v268
    %811 = vmatpush.msra.mxu0 %v264
    %812 = vmatpush.msra.mxu0 %v260
    %813 = vmatpush.msra.mxu0 %v256
    %814 = vmatpush.msra.mxu0 %v252
    %815 = vmatpush.msra.mxu0 %v248
    %816 = vmatpush.msra.mxu0 %v244
    %817 = vmatpush.msra.mxu0 %v240
    %818 = vmatpush.msra.mxu0 %v236
    %819 = vmatpush.msra.mxu0 %v232
    %820 = vmatpush.msra.mxu0 %v228
    %821 = vmatpush.msra.mxu0 %v224
    %822 = vmatmul.f32.gmra.mxu0 %v804
    %v823 = vpop.f32.mrf.mxu0
    %v824 = vadd.f32 0.0, %v823
    %825 = vdwg.mxu0
    %826 = vmatpush.msra.mxu0 %v285
    %827 = vmatpush.msra.mxu0 %v281
    %828 = vmatpush.msra.mxu0 %v277
    %829 = vmatpush.msra.mxu0 %v273
    %830 = vmatpush.msra.mxu0 %v269
    %831 = vmatpush.msra.mxu0 %v265
    %832 = vmatpush.msra.mxu0 %v261
    %833 = vmatpush.msra.mxu0 %v257
    %834 = vmatpush.msra.mxu0 %v253
    %835 = vmatpush.msra.mxu0 %v249
    %836 = vmatpush.msra.mxu0 %v245
    %837 = vmatpush.msra.mxu0 %v241
    %838 = vmatpush.msra.mxu0 %v237
    %839 = vmatpush.msra.mxu0 %v233
    %840 = vmatpush.msra.mxu0 %v229
    %841 = vmatpush.msra.mxu0 %v225
    %842 = vmatmul.f32.gmra.mxu0 %v804
    %v843 = vpop.f32.mrf.mxu0
    %v844 = vadd.f32 0.0, %v843
    %845 = vdwg.mxu0
    %846 = vmatpush.msra.mxu0 %v286
    %847 = vmatpush.msra.mxu0 %v282
    %848 = vmatpush.msra.mxu0 %v278
    %849 = vmatpush.msra.mxu0 %v274
    %850 = vmatpush.msra.mxu0 %v270
    %851 = vmatpush.msra.mxu0 %v266
    %852 = vmatpush.msra.mxu0 %v262
    %853 = vmatpush.msra.mxu0 %v258
    %854 = vmatpush.msra.mxu0 %v254
    %855 = vmatpush.msra.mxu0 %v250
    %856 = vmatpush.msra.mxu0 %v246
    %857 = vmatpush.msra.mxu0 %v242
    %858 = vmatpush.msra.mxu0 %v238
    %859 = vmatpush.msra.mxu0 %v234
    %860 = vmatpush.msra.mxu0 %v230
    %861 = vmatpush.msra.mxu0 %v226
    %862 = vmatmul.f32.gmra.mxu0 %v804
    %v863 = vpop.f32.mrf.mxu0
    %v864 = vadd.f32 0.0, %v863
    %865 = vdwg.mxu0
    %866 = vmatpush.msra.mxu0 %v287
    %867 = vmatpush.msra.mxu0 %v283
    %868 = vmatpush.msra.mxu0 %v279
    %869 = vmatpush.msra.mxu0 %v275
    %870 = vmatpush.msra.mxu0 %v271
    %871 = vmatpush.msra.mxu0 %v267
    %872 = vmatpush.msra.mxu0 %v263
    %873 = vmatpush.msra.mxu0 %v259
    %874 = vmatpush.msra.mxu0 %v255
    %875 = vmatpush.msra.mxu0 %v251
    %876 = vmatpush.msra.mxu0 %v247
    %877 = vmatpush.msra.mxu0 %v243
    %878 = vmatpush.msra.mxu0 %v239
    %879 = vmatpush.msra.mxu0 %v235
    %880 = vmatpush.msra.mxu0 %v231
    %881 = vmatpush.msra.mxu0 %v227
    %882 = vmatmul.f32.gmra.mxu0 %v804
    %v883 = vpop.f32.mrf.mxu0
    %v884 = vadd.f32 0.0, %v883
    %885 = vdwg.mxu0
    %v890 = vrot.slane %v824, 2
    %v891 = vrot.slane %v844, 2
    %v892 = vrot.slane %v864, 2
    %v893 = vrot.slane %v884, 2
    %v898 = vadd.f32 %v800, %v890
    %v899 = vadd.f32 %v801, %v891
    %v900 = vadd.f32 %v802, %v892
    %v901 = vadd.f32 %v803, %v893
    %v902 = vxor.u32 %v898, 2147483648
    %v903 = vxor.u32 %v899, 2147483648
    %v904 = vxor.u32 %v900, 2147483648
    %v905 = vmul.f32 %v902, 1.442695
    %v906 = vpow.pop %v905
    %v907 = vmul.f32 %v903, 1.442695
    %v908 = vpow.pop %v907
    %v909 = vmul.f32 %v904, 1.442695
    %v910 = vpow.pop %v909
    %v911 = vadd.f32 %v906, 1.0
    %v912 = vadd.f32 %v908, 1.0
    %v913 = vadd.f32 %v910, 1.0
    %v914 = vrcp.pop %v911
    %v915 = vmul.f32 %v911, %v914
    %v916 = vsub.f32 1.0, %v915
    %v917 = vmul.f32 %v914, %v916
    %v918 = vadd.f32 %v914, %v917
    %vm919 = vweird.f32 %v911
    %vm920 = vweird.f32 %v914
    %vm921 = vmor %vm919, %vm920
    %v922 = vsel %vm921, %v914, %v918
    %v923 = vand.u32 2147483647, %v911
    %vm924 = vcmp.eq.f32.partialorder %v923, 8.507059e+37
    %v925 = vand.u32 %v911, 2147483648
    %v926 = vor.u32 1.1754944e-38, %v925
    %v927 = vsel %vm924, %v926, %v922
    %v928 = vmul.f32 1.0, %v927
    %v929 = vrcp.pop %v912
    %v930 = vmul.f32 %v912, %v929
    %v931 = vsub.f32 1.0, %v930
    %v932 = vmul.f32 %v929, %v931
    %v933 = vadd.f32 %v929, %v932
    %vm934 = vweird.f32 %v912
    %vm935 = vweird.f32 %v929
    %vm936 = vmor %vm934, %vm935
    %v937 = vsel %vm936, %v929, %v933
    %v938 = vand.u32 2147483647, %v912
    %vm939 = vcmp.eq.f32.partialorder %v938, 8.507059e+37
    %v940 = vand.u32 %v912, 2147483648
    %v941 = vor.u32 1.1754944e-38, %v940
    %v942 = vsel %vm939, %v941, %v937
    %v943 = vmul.f32 1.0, %v942
    %v944 = vrcp.pop %v913
    %v945 = vmul.f32 %v913, %v944
    %v946 = vsub.f32 1.0, %v945
    %v947 = vmul.f32 %v944, %v946
    %v948 = vadd.f32 %v944, %v947
    %vm949 = vweird.f32 %v913
    %vm950 = vweird.f32 %v944
    %vm951 = vmor %vm949, %vm950
    %v952 = vsel %vm951, %v944, %v948
    %v953 = vand.u32 2147483647, %v913
    %vm954 = vcmp.eq.f32.partialorder %v953, 8.507059e+37
    %v955 = vand.u32 %v913, 2147483648
    %v956 = vor.u32 1.1754944e-38, %v955
    %v957 = vsel %vm954, %v956, %v952
    %v958 = vmul.f32 1.0, %v957
    %v959 = vtanh.pop %v901
    %v961 = vrot.slane %v787, 6
    %v963 = vmul.f32 %v943, %v961
    %v964 = vmul.f32 %v928, %v959
    %v965 = vadd.f32 %v963, %v964
    %v966 = vtanh.pop %v965
    %v967 = vmul.f32 %v958, %v966
    %969 = vst [vmem:[#allocation1] sm:$0xff] %v967
    %s970 = scalar_lea.vmem [#allocation1], 6
    %v971 = vld [vmem:[%s970] ss:$9 sm:$0xff]
    %s972 = scalar_lea.vmem [#allocation1], 7
    %v973 = vld [vmem:[%s972] ss:$9 sm:$0xff]
    %976 = vst [vmem:[#allocation11 + $0x3] sm:$0x1] %v971
    %977 = vst [vmem:[#allocation11 + $0xb] sm:$0x1] %v973
    %v978 = vld [vmem:[#allocation2 + $0x20] sm:$0x3]
    %v979 = vld [vmem:[#allocation2 + $0x28] sm:$0x3]
    %v980 = vld [vmem:[#allocation2 + $0x30] sm:$0x3]
    %v981 = vld [vmem:[#allocation2 + $0x38] sm:$0x3]
    %v982 = vrot.slane %v967, 6
    %984 = vmatpush.msra.mxu0 %v284
    %985 = vmatpush.msra.mxu0 %v280
    %986 = vmatpush.msra.mxu0 %v276
    %987 = vmatpush.msra.mxu0 %v272
    %988 = vmatpush.msra.mxu0 %v268
    %989 = vmatpush.msra.mxu0 %v264
    %990 = vmatpush.msra.mxu0 %v260
    %991 = vmatpush.msra.mxu0 %v256
    %992 = vmatpush.msra.mxu0 %v252
    %993 = vmatpush.msra.mxu0 %v248
    %994 = vmatpush.msra.mxu0 %v244
    %995 = vmatpush.msra.mxu0 %v240
    %996 = vmatpush.msra.mxu0 %v236
    %997 = vmatpush.msra.mxu0 %v232
    %998 = vmatpush.msra.mxu0 %v228
    %999 = vmatpush.msra.mxu0 %v224
    %1000 = vmatmul.f32.gmra.mxu0 %v982
    %v1001 = vpop.f32.mrf.mxu0
    %v1002 = vadd.f32 0.0, %v1001
    %1003 = vdwg.mxu0
    %1004 = vmatpush.msra.mxu0 %v285
    %1005 = vmatpush.msra.mxu0 %v281
    %1006 = vmatpush.msra.mxu0 %v277
    %1007 = vmatpush.msra.mxu0 %v273
    %1008 = vmatpush.msra.mxu0 %v269
    %1009 = vmatpush.msra.mxu0 %v265
    %1010 = vmatpush.msra.mxu0 %v261
    %1011 = vmatpush.msra.mxu0 %v257
    %1012 = vmatpush.msra.mxu0 %v253
    %1013 = vmatpush.msra.mxu0 %v249
    %1014 = vmatpush.msra.mxu0 %v245
    %1015 = vmatpush.msra.mxu0 %v241
    %1016 = vmatpush.msra.mxu0 %v237
    %1017 = vmatpush.msra.mxu0 %v233
    %1018 = vmatpush.msra.mxu0 %v229
    %1019 = vmatpush.msra.mxu0 %v225
    %1020 = vmatmul.f32.gmra.mxu0 %v982
    %v1021 = vpop.f32.mrf.mxu0
    %v1022 = vadd.f32 0.0, %v1021
    %1023 = vdwg.mxu0
    %1024 = vmatpush.msra.mxu0 %v286
    %1025 = vmatpush.msra.mxu0 %v282
    %1026 = vmatpush.msra.mxu0 %v278
    %1027 = vmatpush.msra.mxu0 %v274
    %1028 = vmatpush.msra.mxu0 %v270
    %1029 = vmatpush.msra.mxu0 %v266
    %1030 = vmatpush.msra.mxu0 %v262
    %1031 = vmatpush.msra.mxu0 %v258
    %1032 = vmatpush.msra.mxu0 %v254
    %1033 = vmatpush.msra.mxu0 %v250
    %1034 = vmatpush.msra.mxu0 %v246
    %1035 = vmatpush.msra.mxu0 %v242
    %1036 = vmatpush.msra.mxu0 %v238
    %1037 = vmatpush.msra.mxu0 %v234
    %1038 = vmatpush.msra.mxu0 %v230
    %1039 = vmatpush.msra.mxu0 %v226
    %1040 = vmatmul.f32.gmra.mxu0 %v982
    %v1041 = vpop.f32.mrf.mxu0
    %v1042 = vadd.f32 0.0, %v1041
    %1043 = vdwg.mxu0
    %1044 = vmatpush.msra.mxu0 %v287
    %1045 = vmatpush.msra.mxu0 %v283
    %1046 = vmatpush.msra.mxu0 %v279
    %1047 = vmatpush.msra.mxu0 %v275
    %1048 = vmatpush.msra.mxu0 %v271
    %1049 = vmatpush.msra.mxu0 %v267
    %1050 = vmatpush.msra.mxu0 %v263
    %1051 = vmatpush.msra.mxu0 %v259
    %1052 = vmatpush.msra.mxu0 %v255
    %1053 = vmatpush.msra.mxu0 %v251
    %1054 = vmatpush.msra.mxu0 %v247
    %1055 = vmatpush.msra.mxu0 %v243
    %1056 = vmatpush.msra.mxu0 %v239
    %1057 = vmatpush.msra.mxu0 %v235
    %1058 = vmatpush.msra.mxu0 %v231
    %1059 = vmatpush.msra.mxu0 %v227
    %1060 = vmatmul.f32.gmra.mxu0 %v982
    %v1061 = vpop.f32.mrf.mxu0
    %v1062 = vadd.f32 0.0, %v1061
    %1063 = vdwg.mxu0
    %v1064 = vadd.f32 %v978, %v1002
    %v1065 = vadd.f32 %v979, %v1022
    %v1066 = vadd.f32 %v980, %v1042
    %v1067 = vadd.f32 %v981, %v1062
    %v1068 = vxor.u32 %v1064, 2147483648
    %v1069 = vxor.u32 %v1065, 2147483648
    %v1070 = vxor.u32 %v1066, 2147483648
    %v1071 = vmul.f32 %v1068, 1.442695
    %v1072 = vpow.pop %v1071
    %v1073 = vmul.f32 %v1069, 1.442695
    %v1074 = vpow.pop %v1073
    %v1075 = vmul.f32 %v1070, 1.442695
    %v1076 = vpow.pop %v1075
    %v1077 = vadd.f32 %v1072, 1.0
    %v1078 = vadd.f32 %v1074, 1.0
    %v1079 = vadd.f32 %v1076, 1.0
    %v1080 = vrcp.pop %v1077
    %v1081 = vmul.f32 %v1077, %v1080
    %v1082 = vsub.f32 1.0, %v1081
    %v1083 = vmul.f32 %v1080, %v1082
    %v1084 = vadd.f32 %v1080, %v1083
    %vm1085 = vweird.f32 %v1077
    %vm1086 = vweird.f32 %v1080
    %vm1087 = vmor %vm1085, %vm1086
    %v1088 = vsel %vm1087, %v1080, %v1084
    %v1089 = vand.u32 2147483647, %v1077
    %vm1090 = vcmp.eq.f32.partialorder %v1089, 8.507059e+37
    %v1091 = vand.u32 %v1077, 2147483648
    %v1092 = vor.u32 1.1754944e-38, %v1091
    %v1093 = vsel %vm1090, %v1092, %v1088
    %v1094 = vmul.f32 1.0, %v1093
    %v1095 = vrcp.pop %v1078
    %v1096 = vmul.f32 %v1078, %v1095
    %v1097 = vsub.f32 1.0, %v1096
    %v1098 = vmul.f32 %v1095, %v1097
    %v1099 = vadd.f32 %v1095, %v1098
    %vm1100 = vweird.f32 %v1078
    %vm1101 = vweird.f32 %v1095
    %vm1102 = vmor %vm1100, %vm1101
    %v1103 = vsel %vm1102, %v1095, %v1099
    %v1104 = vand.u32 2147483647, %v1078
    %vm1105 = vcmp.eq.f32.partialorder %v1104, 8.507059e+37
    %v1106 = vand.u32 %v1078, 2147483648
    %v1107 = vor.u32 1.1754944e-38, %v1106
    %v1108 = vsel %vm1105, %v1107, %v1103
    %v1109 = vmul.f32 1.0, %v1108
    %v1110 = vrcp.pop %v1079
    %v1111 = vmul.f32 %v1079, %v1110
    %v1112 = vsub.f32 1.0, %v1111
    %v1113 = vmul.f32 %v1110, %v1112
    %v1114 = vadd.f32 %v1110, %v1113
    %vm1115 = vweird.f32 %v1079
    %vm1116 = vweird.f32 %v1110
    %vm1117 = vmor %vm1115, %vm1116
    %v1118 = vsel %vm1117, %v1110, %v1114
    %v1119 = vand.u32 2147483647, %v1079
    %vm1120 = vcmp.eq.f32.partialorder %v1119, 8.507059e+37
    %v1121 = vand.u32 %v1079, 2147483648
    %v1122 = vor.u32 1.1754944e-38, %v1121
    %v1123 = vsel %vm1120, %v1122, %v1118
    %v1124 = vmul.f32 1.0, %v1123
    %v1125 = vtanh.pop %v1067
    %v1127 = vrot.slane %v965, 6
    %v1129 = vmul.f32 %v1109, %v1127
    %v1130 = vmul.f32 %v1094, %v1125
    %v1131 = vadd.f32 %v1129, %v1130
    %v1132 = vtanh.pop %v1131
    %v1133 = vmul.f32 %v1124, %v1132
    %v1135 = vrot.slane %v1133, 1
    %1137 = vst [vmem:[#allocation11 + $0x4] sm:$0x1] %v1133
    %1138 = vst [vmem:[#allocation11 + $0xc] sm:$0x1] %v1135
    %v1139 = vld [vmem:[#allocation2 + $0x20] sm:$0xc]
    %v1140 = vld [vmem:[#allocation2 + $0x28] sm:$0xc]
    %v1141 = vld [vmem:[#allocation2 + $0x30] sm:$0xc]
    %v1142 = vld [vmem:[#allocation2 + $0x38] sm:$0xc]
    %1143 = vmatpush.msra.mxu0 %v284
    %1144 = vmatpush.msra.mxu0 %v280
    %1145 = vmatpush.msra.mxu0 %v276
    %1146 = vmatpush.msra.mxu0 %v272
    %1147 = vmatpush.msra.mxu0 %v268
    %1148 = vmatpush.msra.mxu0 %v264
    %1149 = vmatpush.msra.mxu0 %v260
    %1150 = vmatpush.msra.mxu0 %v256
    %1151 = vmatpush.msra.mxu0 %v252
    %1152 = vmatpush.msra.mxu0 %v248
    %1153 = vmatpush.msra.mxu0 %v244
    %1154 = vmatpush.msra.mxu0 %v240
    %1155 = vmatpush.msra.mxu0 %v236
    %1156 = vmatpush.msra.mxu0 %v232
    %1157 = vmatpush.msra.mxu0 %v228
    %1158 = vmatpush.msra.mxu0 %v224
    %1159 = vmatmul.f32.gmra.mxu0 %v1133
    %v1160 = vpop.f32.mrf.mxu0
    %v1161 = vadd.f32 0.0, %v1160
    %1162 = vdwg.mxu0
    %1163 = vmatpush.msra.mxu0 %v285
    %1164 = vmatpush.msra.mxu0 %v281
    %1165 = vmatpush.msra.mxu0 %v277
    %1166 = vmatpush.msra.mxu0 %v273
    %1167 = vmatpush.msra.mxu0 %v269
    %1168 = vmatpush.msra.mxu0 %v265
    %1169 = vmatpush.msra.mxu0 %v261
    %1170 = vmatpush.msra.mxu0 %v257
    %1171 = vmatpush.msra.mxu0 %v253
    %1172 = vmatpush.msra.mxu0 %v249
    %1173 = vmatpush.msra.mxu0 %v245
    %1174 = vmatpush.msra.mxu0 %v241
    %1175 = vmatpush.msra.mxu0 %v237
    %1176 = vmatpush.msra.mxu0 %v233
    %1177 = vmatpush.msra.mxu0 %v229
    %1178 = vmatpush.msra.mxu0 %v225
    %1179 = vmatmul.f32.gmra.mxu0 %v1133
    %v1180 = vpop.f32.mrf.mxu0
    %v1181 = vadd.f32 0.0, %v1180
    %1182 = vdwg.mxu0
    %1183 = vmatpush.msra.mxu0 %v286
    %1184 = vmatpush.msra.mxu0 %v282
    %1185 = vmatpush.msra.mxu0 %v278
    %1186 = vmatpush.msra.mxu0 %v274
    %1187 = vmatpush.msra.mxu0 %v270
    %1188 = vmatpush.msra.mxu0 %v266
    %1189 = vmatpush.msra.mxu0 %v262
    %1190 = vmatpush.msra.mxu0 %v258
    %1191 = vmatpush.msra.mxu0 %v254
    %1192 = vmatpush.msra.mxu0 %v250
    %1193 = vmatpush.msra.mxu0 %v246
    %1194 = vmatpush.msra.mxu0 %v242
    %1195 = vmatpush.msra.mxu0 %v238
    %1196 = vmatpush.msra.mxu0 %v234
    %1197 = vmatpush.msra.mxu0 %v230
    %1198 = vmatpush.msra.mxu0 %v226
    %1199 = vmatmul.f32.gmra.mxu0 %v1133
    %v1200 = vpop.f32.mrf.mxu0
    %v1201 = vadd.f32 0.0, %v1200
    %1202 = vdwg.mxu0
    %1203 = vmatpush.msra.mxu0 %v287
    %1204 = vmatpush.msra.mxu0 %v283
    %1205 = vmatpush.msra.mxu0 %v279
    %1206 = vmatpush.msra.mxu0 %v275
    %1207 = vmatpush.msra.mxu0 %v271
    %1208 = vmatpush.msra.mxu0 %v267
    %1209 = vmatpush.msra.mxu0 %v263
    %1210 = vmatpush.msra.mxu0 %v259
    %1211 = vmatpush.msra.mxu0 %v255
    %1212 = vmatpush.msra.mxu0 %v251
    %1213 = vmatpush.msra.mxu0 %v247
    %1214 = vmatpush.msra.mxu0 %v243
    %1215 = vmatpush.msra.mxu0 %v239
    %1216 = vmatpush.msra.mxu0 %v235
    %1217 = vmatpush.msra.mxu0 %v231
    %1218 = vmatpush.msra.mxu0 %v227
    %1219 = vmatmul.f32.gmra.mxu0 %v1133
    %v1220 = vpop.f32.mrf.mxu0
    %v1221 = vadd.f32 0.0, %v1220
    %1222 = vdwg.mxu0
    %v1227 = vrot.slane %v1161, 6
    %v1228 = vrot.slane %v1181, 6
    %v1229 = vrot.slane %v1201, 6
    %v1230 = vrot.slane %v1221, 6
    %v1235 = vadd.f32 %v1139, %v1227
    %v1236 = vadd.f32 %v1140, %v1228
    %v1237 = vadd.f32 %v1141, %v1229
    %v1238 = vadd.f32 %v1142, %v1230
    %v1239 = vxor.u32 %v1235, 2147483648
    %v1240 = vxor.u32 %v1236, 2147483648
    %v1241 = vxor.u32 %v1237, 2147483648
    %v1242 = vmul.f32 %v1239, 1.442695
    %v1243 = vpow.pop %v1242
    %v1244 = vmul.f32 %v1240, 1.442695
    %v1245 = vpow.pop %v1244
    %v1246 = vmul.f32 %v1241, 1.442695
    %v1247 = vpow.pop %v1246
    %v1248 = vadd.f32 %v1243, 1.0
    %v1249 = vadd.f32 %v1245, 1.0
    %v1250 = vadd.f32 %v1247, 1.0
    %v1251 = vrcp.pop %v1248
    %v1252 = vmul.f32 %v1248, %v1251
    %v1253 = vsub.f32 1.0, %v1252
    %v1254 = vmul.f32 %v1251, %v1253
    %v1255 = vadd.f32 %v1251, %v1254
    %vm1256 = vweird.f32 %v1248
    %vm1257 = vweird.f32 %v1251
    %vm1258 = vmor %vm1256, %vm1257
    %v1259 = vsel %vm1258, %v1251, %v1255
    %v1260 = vand.u32 2147483647, %v1248
    %vm1261 = vcmp.eq.f32.partialorder %v1260, 8.507059e+37
    %v1262 = vand.u32 %v1248, 2147483648
    %v1263 = vor.u32 1.1754944e-38, %v1262
    %v1264 = vsel %vm1261, %v1263, %v1259
    %v1265 = vmul.f32 1.0, %v1264
    %v1266 = vrcp.pop %v1249
    %v1267 = vmul.f32 %v1249, %v1266
    %v1268 = vsub.f32 1.0, %v1267
    %v1269 = vmul.f32 %v1266, %v1268
    %v1270 = vadd.f32 %v1266, %v1269
    %vm1271 = vweird.f32 %v1249
    %vm1272 = vweird.f32 %v1266
    %vm1273 = vmor %vm1271, %vm1272
    %v1274 = vsel %vm1273, %v1266, %v1270
    %v1275 = vand.u32 2147483647, %v1249
    %vm1276 = vcmp.eq.f32.partialorder %v1275, 8.507059e+37
    %v1277 = vand.u32 %v1249, 2147483648
    %v1278 = vor.u32 1.1754944e-38, %v1277
    %v1279 = vsel %vm1276, %v1278, %v1274
    %v1280 = vmul.f32 1.0, %v1279
    %v1281 = vrcp.pop %v1250
    %v1282 = vmul.f32 %v1250, %v1281
    %v1283 = vsub.f32 1.0, %v1282
    %v1284 = vmul.f32 %v1281, %v1283
    %v1285 = vadd.f32 %v1281, %v1284
    %vm1286 = vweird.f32 %v1250
    %vm1287 = vweird.f32 %v1281
    %vm1288 = vmor %vm1286, %vm1287
    %v1289 = vsel %vm1288, %v1281, %v1285
    %v1290 = vand.u32 2147483647, %v1250
    %vm1291 = vcmp.eq.f32.partialorder %v1290, 8.507059e+37
    %v1292 = vand.u32 %v1250, 2147483648
    %v1293 = vor.u32 1.1754944e-38, %v1292
    %v1294 = vsel %vm1291, %v1293, %v1289
    %v1295 = vmul.f32 1.0, %v1294
    %v1296 = vtanh.pop %v1238
    %v1298 = vrot.slane %v1131, 6
    %v1300 = vmul.f32 %v1280, %v1298
    %v1301 = vmul.f32 %v1265, %v1296
    %v1302 = vadd.f32 %v1300, %v1301
    %v1303 = vtanh.pop %v1302
    %v1304 = vmul.f32 %v1295, %v1303
    %1306 = vst [vmem:[#allocation1] sm:$0xff] %v1304
    %s1307 = scalar_lea.vmem [#allocation1], 2
    %v1308 = vld [vmem:[%s1307] ss:$9 sm:$0xff]
    %s1309 = scalar_lea.vmem [#allocation1], 3
    %v1310 = vld [vmem:[%s1309] ss:$9 sm:$0xff]
    %1313 = vst [vmem:[#allocation11 + $0x5] sm:$0x1] %v1308
    %1314 = vst [vmem:[#allocation11 + $0xd] sm:$0x1] %v1310
    %v1315 = vld [vmem:[#allocation2 + $0x20] sm:$0x30]
    %v1316 = vld [vmem:[#allocation2 + $0x28] sm:$0x30]
    %v1317 = vld [vmem:[#allocation2 + $0x30] sm:$0x30]
    %v1318 = vld [vmem:[#allocation2 + $0x38] sm:$0x30]
    %v1319 = vrot.slane %v1304, 2
    %1321 = vmatpush.msra.mxu0 %v284
    %1322 = vmatpush.msra.mxu0 %v280
    %1323 = vmatpush.msra.mxu0 %v276
    %1324 = vmatpush.msra.mxu0 %v272
    %1325 = vmatpush.msra.mxu0 %v268
    %1326 = vmatpush.msra.mxu0 %v264
    %1327 = vmatpush.msra.mxu0 %v260
    %1328 = vmatpush.msra.mxu0 %v256
    %1329 = vmatpush.msra.mxu0 %v252
    %1330 = vmatpush.msra.mxu0 %v248
    %1331 = vmatpush.msra.mxu0 %v244
    %1332 = vmatpush.msra.mxu0 %v240
    %1333 = vmatpush.msra.mxu0 %v236
    %1334 = vmatpush.msra.mxu0 %v232
    %1335 = vmatpush.msra.mxu0 %v228
    %1336 = vmatpush.msra.mxu0 %v224
    %1337 = vmatmul.f32.gmra.mxu0 %v1319
    %v1338 = vpop.f32.mrf.mxu0
    %v1339 = vadd.f32 0.0, %v1338
    %1340 = vdwg.mxu0
    %1341 = vmatpush.msra.mxu0 %v285
    %1342 = vmatpush.msra.mxu0 %v281
    %1343 = vmatpush.msra.mxu0 %v277
    %1344 = vmatpush.msra.mxu0 %v273
    %1345 = vmatpush.msra.mxu0 %v269
    %1346 = vmatpush.msra.mxu0 %v265
    %1347 = vmatpush.msra.mxu0 %v261
    %1348 = vmatpush.msra.mxu0 %v257
    %1349 = vmatpush.msra.mxu0 %v253
    %1350 = vmatpush.msra.mxu0 %v249
    %1351 = vmatpush.msra.mxu0 %v245
    %1352 = vmatpush.msra.mxu0 %v241
    %1353 = vmatpush.msra.mxu0 %v237
    %1354 = vmatpush.msra.mxu0 %v233
    %1355 = vmatpush.msra.mxu0 %v229
    %1356 = vmatpush.msra.mxu0 %v225
    %1357 = vmatmul.f32.gmra.mxu0 %v1319
    %v1358 = vpop.f32.mrf.mxu0
    %v1359 = vadd.f32 0.0, %v1358
    %1360 = vdwg.mxu0
    %1361 = vmatpush.msra.mxu0 %v286
    %1362 = vmatpush.msra.mxu0 %v282
    %1363 = vmatpush.msra.mxu0 %v278
    %1364 = vmatpush.msra.mxu0 %v274
    %1365 = vmatpush.msra.mxu0 %v270
    %1366 = vmatpush.msra.mxu0 %v266
    %1367 = vmatpush.msra.mxu0 %v262
    %1368 = vmatpush.msra.mxu0 %v258
    %1369 = vmatpush.msra.mxu0 %v254
    %1370 = vmatpush.msra.mxu0 %v250
    %1371 = vmatpush.msra.mxu0 %v246
    %1372 = vmatpush.msra.mxu0 %v242
    %1373 = vmatpush.msra.mxu0 %v238
    %1374 = vmatpush.msra.mxu0 %v234
    %1375 = vmatpush.msra.mxu0 %v230
    %1376 = vmatpush.msra.mxu0 %v226
    %1377 = vmatmul.f32.gmra.mxu0 %v1319
    %v1378 = vpop.f32.mrf.mxu0
    %v1379 = vadd.f32 0.0, %v1378
    %1380 = vdwg.mxu0
    %1381 = vmatpush.msra.mxu0 %v287
    %1382 = vmatpush.msra.mxu0 %v283
    %1383 = vmatpush.msra.mxu0 %v279
    %1384 = vmatpush.msra.mxu0 %v275
    %1385 = vmatpush.msra.mxu0 %v271
    %1386 = vmatpush.msra.mxu0 %v267
    %1387 = vmatpush.msra.mxu0 %v263
    %1388 = vmatpush.msra.mxu0 %v259
    %1389 = vmatpush.msra.mxu0 %v255
    %1390 = vmatpush.msra.mxu0 %v251
    %1391 = vmatpush.msra.mxu0 %v247
    %1392 = vmatpush.msra.mxu0 %v243
    %1393 = vmatpush.msra.mxu0 %v239
    %1394 = vmatpush.msra.mxu0 %v235
    %1395 = vmatpush.msra.mxu0 %v231
    %1396 = vmatpush.msra.mxu0 %v227
    %1397 = vmatmul.f32.gmra.mxu0 %v1319
    %v1398 = vpop.f32.mrf.mxu0
    %v1399 = vadd.f32 0.0, %v1398
    %1400 = vdwg.mxu0
    %v1405 = vrot.slane %v1339, 4
    %v1406 = vrot.slane %v1359, 4
    %v1407 = vrot.slane %v1379, 4
    %v1408 = vrot.slane %v1399, 4
    %v1413 = vadd.f32 %v1315, %v1405
    %v1414 = vadd.f32 %v1316, %v1406
    %v1415 = vadd.f32 %v1317, %v1407
    %v1416 = vadd.f32 %v1318, %v1408
    %v1417 = vxor.u32 %v1413, 2147483648
    %v1418 = vxor.u32 %v1414, 2147483648
    %v1419 = vxor.u32 %v1415, 2147483648
    %v1420 = vmul.f32 %v1417, 1.442695
    %v1421 = vpow.pop %v1420
    %v1422 = vmul.f32 %v1418, 1.442695
    %v1423 = vpow.pop %v1422
    %v1424 = vmul.f32 %v1419, 1.442695
    %v1425 = vpow.pop %v1424
    %v1426 = vadd.f32 %v1421, 1.0
    %v1427 = vadd.f32 %v1423, 1.0
    %v1428 = vadd.f32 %v1425, 1.0
    %v1429 = vrcp.pop %v1426
    %v1430 = vmul.f32 %v1426, %v1429
    %v1431 = vsub.f32 1.0, %v1430
    %v1432 = vmul.f32 %v1429, %v1431
    %v1433 = vadd.f32 %v1429, %v1432
    %vm1434 = vweird.f32 %v1426
    %vm1435 = vweird.f32 %v1429
    %vm1436 = vmor %vm1434, %vm1435
    %v1437 = vsel %vm1436, %v1429, %v1433
    %v1438 = vand.u32 2147483647, %v1426
    %vm1439 = vcmp.eq.f32.partialorder %v1438, 8.507059e+37
    %v1440 = vand.u32 %v1426, 2147483648
    %v1441 = vor.u32 1.1754944e-38, %v1440
    %v1442 = vsel %vm1439, %v1441, %v1437
    %v1443 = vmul.f32 1.0, %v1442
    %v1444 = vrcp.pop %v1427
    %v1445 = vmul.f32 %v1427, %v1444
    %v1446 = vsub.f32 1.0, %v1445
    %v1447 = vmul.f32 %v1444, %v1446
    %v1448 = vadd.f32 %v1444, %v1447
    %vm1449 = vweird.f32 %v1427
    %vm1450 = vweird.f32 %v1444
    %vm1451 = vmor %vm1449, %vm1450
    %v1452 = vsel %vm1451, %v1444, %v1448
    %v1453 = vand.u32 2147483647, %v1427
    %vm1454 = vcmp.eq.f32.partialorder %v1453, 8.507059e+37
    %v1455 = vand.u32 %v1427, 2147483648
    %v1456 = vor.u32 1.1754944e-38, %v1455
    %v1457 = vsel %vm1454, %v1456, %v1452
    %v1458 = vmul.f32 1.0, %v1457
    %v1459 = vrcp.pop %v1428
    %v1460 = vmul.f32 %v1428, %v1459
    %v1461 = vsub.f32 1.0, %v1460
    %v1462 = vmul.f32 %v1459, %v1461
    %v1463 = vadd.f32 %v1459, %v1462
    %vm1464 = vweird.f32 %v1428
    %vm1465 = vweird.f32 %v1459
    %vm1466 = vmor %vm1464, %vm1465
    %v1467 = vsel %vm1466, %v1459, %v1463
    %v1468 = vand.u32 2147483647, %v1428
    %vm1469 = vcmp.eq.f32.partialorder %v1468, 8.507059e+37
    %v1470 = vand.u32 %v1428, 2147483648
    %v1471 = vor.u32 1.1754944e-38, %v1470
    %v1472 = vsel %vm1469, %v1471, %v1467
    %v1473 = vmul.f32 1.0, %v1472
    %v1474 = vtanh.pop %v1416
    %v1476 = vrot.slane %v1302, 6
    %v1478 = vmul.f32 %v1458, %v1476
    %v1479 = vmul.f32 %v1443, %v1474
    %v1480 = vadd.f32 %v1478, %v1479
    %v1481 = vtanh.pop %v1480
    %v1482 = vmul.f32 %v1473, %v1481
    %1484 = vst [vmem:[#allocation1] sm:$0xff] %v1482
    %s1485 = scalar_lea.vmem [#allocation1], 4
    %v1486 = vld [vmem:[%s1485] ss:$9 sm:$0xff]
    %s1487 = scalar_lea.vmem [#allocation1], 5
    %v1488 = vld [vmem:[%s1487] ss:$9 sm:$0xff]
    %1491 = vst [vmem:[#allocation11 + $0x6] sm:$0x1] %v1486
    %1492 = vst [vmem:[#allocation11 + $0xe] sm:$0x1] %v1488
    %v1493 = vld [vmem:[#allocation2 + $0x20] sm:$0xc0]
    %v1494 = vld [vmem:[#allocation2 + $0x28] sm:$0xc0]
    %v1495 = vld [vmem:[#allocation2 + $0x30] sm:$0xc0]
    %v1496 = vld [vmem:[#allocation2 + $0x38] sm:$0xc0]
    %v1497 = vrot.slane %v1482, 4
    %1499 = vmatpush.msra.mxu0 %v284
    %1500 = vmatpush.msra.mxu0 %v280
    %1501 = vmatpush.msra.mxu0 %v276
    %1502 = vmatpush.msra.mxu0 %v272
    %1503 = vmatpush.msra.mxu0 %v268
    %1504 = vmatpush.msra.mxu0 %v264
    %1505 = vmatpush.msra.mxu0 %v260
    %1506 = vmatpush.msra.mxu0 %v256
    %1507 = vmatpush.msra.mxu0 %v252
    %1508 = vmatpush.msra.mxu0 %v248
    %1509 = vmatpush.msra.mxu0 %v244
    %1510 = vmatpush.msra.mxu0 %v240
    %1511 = vmatpush.msra.mxu0 %v236
    %1512 = vmatpush.msra.mxu0 %v232
    %1513 = vmatpush.msra.mxu0 %v228
    %1514 = vmatpush.msra.mxu0 %v224
    %1515 = vmatmul.f32.gmra.mxu0 %v1497
    %v1516 = vpop.f32.mrf.mxu0
    %v1517 = vadd.f32 0.0, %v1516
    %1518 = vdwg.mxu0
    %1519 = vmatpush.msra.mxu0 %v285
    %1520 = vmatpush.msra.mxu0 %v281
    %1521 = vmatpush.msra.mxu0 %v277
    %1522 = vmatpush.msra.mxu0 %v273
    %1523 = vmatpush.msra.mxu0 %v269
    %1524 = vmatpush.msra.mxu0 %v265
    %1525 = vmatpush.msra.mxu0 %v261
    %1526 = vmatpush.msra.mxu0 %v257
    %1527 = vmatpush.msra.mxu0 %v253
    %1528 = vmatpush.msra.mxu0 %v249
    %1529 = vmatpush.msra.mxu0 %v245
    %1530 = vmatpush.msra.mxu0 %v241
    %1531 = vmatpush.msra.mxu0 %v237
    %1532 = vmatpush.msra.mxu0 %v233
    %1533 = vmatpush.msra.mxu0 %v229
    %1534 = vmatpush.msra.mxu0 %v225
    %1535 = vmatmul.f32.gmra.mxu0 %v1497
    %v1536 = vpop.f32.mrf.mxu0
    %v1537 = vadd.f32 0.0, %v1536
    %1538 = vdwg.mxu0
    %1539 = vmatpush.msra.mxu0 %v286
    %1540 = vmatpush.msra.mxu0 %v282
    %1541 = vmatpush.msra.mxu0 %v278
    %1542 = vmatpush.msra.mxu0 %v274
    %1543 = vmatpush.msra.mxu0 %v270
    %1544 = vmatpush.msra.mxu0 %v266
    %1545 = vmatpush.msra.mxu0 %v262
    %1546 = vmatpush.msra.mxu0 %v258
    %1547 = vmatpush.msra.mxu0 %v254
    %1548 = vmatpush.msra.mxu0 %v250
    %1549 = vmatpush.msra.mxu0 %v246
    %1550 = vmatpush.msra.mxu0 %v242
    %1551 = vmatpush.msra.mxu0 %v238
    %1552 = vmatpush.msra.mxu0 %v234
    %1553 = vmatpush.msra.mxu0 %v230
    %1554 = vmatpush.msra.mxu0 %v226
    %1555 = vmatmul.f32.gmra.mxu0 %v1497
    %v1556 = vpop.f32.mrf.mxu0
    %v1557 = vadd.f32 0.0, %v1556
    %1558 = vdwg.mxu0
    %1559 = vmatpush.msra.mxu0 %v287
    %1560 = vmatpush.msra.mxu0 %v283
    %1561 = vmatpush.msra.mxu0 %v279
    %1562 = vmatpush.msra.mxu0 %v275
    %1563 = vmatpush.msra.mxu0 %v271
    %1564 = vmatpush.msra.mxu0 %v267
    %1565 = vmatpush.msra.mxu0 %v263
    %1566 = vmatpush.msra.mxu0 %v259
    %1567 = vmatpush.msra.mxu0 %v255
    %1568 = vmatpush.msra.mxu0 %v251
    %1569 = vmatpush.msra.mxu0 %v247
    %1570 = vmatpush.msra.mxu0 %v243
    %1571 = vmatpush.msra.mxu0 %v239
    %1572 = vmatpush.msra.mxu0 %v235
    %1573 = vmatpush.msra.mxu0 %v231
    %1574 = vmatpush.msra.mxu0 %v227
    %1575 = vmatmul.f32.gmra.mxu0 %v1497
    %v1576 = vpop.f32.mrf.mxu0
    %v1577 = vadd.f32 0.0, %v1576
    %1578 = vdwg.mxu0
    %v1583 = vrot.slane %v1517, 2
    %v1584 = vrot.slane %v1537, 2
    %v1585 = vrot.slane %v1557, 2
    %v1586 = vrot.slane %v1577, 2
    %v1591 = vadd.f32 %v1493, %v1583
    %v1592 = vadd.f32 %v1494, %v1584
    %v1593 = vadd.f32 %v1495, %v1585
    %v1594 = vadd.f32 %v1496, %v1586
    %v1595 = vxor.u32 %v1591, 2147483648
    %v1596 = vxor.u32 %v1592, 2147483648
    %v1597 = vxor.u32 %v1593, 2147483648
    %v1598 = vmul.f32 %v1595, 1.442695
    %v1599 = vpow.pop %v1598
    %v1600 = vmul.f32 %v1596, 1.442695
    %v1601 = vpow.pop %v1600
    %v1602 = vmul.f32 %v1597, 1.442695
    %v1603 = vpow.pop %v1602
    %v1604 = vadd.f32 %v1599, 1.0
    %v1605 = vadd.f32 %v1601, 1.0
    %v1606 = vadd.f32 %v1603, 1.0
    %v1607 = vrcp.pop %v1604
    %v1608 = vmul.f32 %v1604, %v1607
    %v1609 = vsub.f32 1.0, %v1608
    %v1610 = vmul.f32 %v1607, %v1609
    %v1611 = vadd.f32 %v1607, %v1610
    %vm1612 = vweird.f32 %v1604
    %vm1613 = vweird.f32 %v1607
    %vm1614 = vmor %vm1612, %vm1613
    %v1615 = vsel %vm1614, %v1607, %v1611
    %v1616 = vand.u32 2147483647, %v1604
    %vm1617 = vcmp.eq.f32.partialorder %v1616, 8.507059e+37
    %v1618 = vand.u32 %v1604, 2147483648
    %v1619 = vor.u32 1.1754944e-38, %v1618
    %v1620 = vsel %vm1617, %v1619, %v1615
    %v1621 = vmul.f32 1.0, %v1620
    %v1622 = vrcp.pop %v1605
    %v1623 = vmul.f32 %v1605, %v1622
    %v1624 = vsub.f32 1.0, %v1623
    %v1625 = vmul.f32 %v1622, %v1624
    %v1626 = vadd.f32 %v1622, %v1625
    %vm1627 = vweird.f32 %v1605
    %vm1628 = vweird.f32 %v1622
    %vm1629 = vmor %vm1627, %vm1628
    %v1630 = vsel %vm1629, %v1622, %v1626
    %v1631 = vand.u32 2147483647, %v1605
    %vm1632 = vcmp.eq.f32.partialorder %v1631, 8.507059e+37
    %v1633 = vand.u32 %v1605, 2147483648
    %v1634 = vor.u32 1.1754944e-38, %v1633
    %v1635 = vsel %vm1632, %v1634, %v1630
    %v1636 = vmul.f32 1.0, %v1635
    %v1637 = vrcp.pop %v1606
    %v1638 = vmul.f32 %v1606, %v1637
    %v1639 = vsub.f32 1.0, %v1638
    %v1640 = vmul.f32 %v1637, %v1639
    %v1641 = vadd.f32 %v1637, %v1640
    %vm1642 = vweird.f32 %v1606
    %vm1643 = vweird.f32 %v1637
    %vm1644 = vmor %vm1642, %vm1643
    %v1645 = vsel %vm1644, %v1637, %v1641
    %v1646 = vand.u32 2147483647, %v1606
    %vm1647 = vcmp.eq.f32.partialorder %v1646, 8.507059e+37
    %v1648 = vand.u32 %v1606, 2147483648
    %v1649 = vor.u32 1.1754944e-38, %v1648
    %v1650 = vsel %vm1647, %v1649, %v1645
    %v1651 = vmul.f32 1.0, %v1650
    %v1652 = vtanh.pop %v1594
    %v1654 = vrot.slane %v1480, 6
    %v1656 = vmul.f32 %v1636, %v1654
    %v1657 = vmul.f32 %v1621, %v1652
    %v1658 = vadd.f32 %v1656, %v1657
    %v1659 = vtanh.pop %v1658
    %v1660 = vmul.f32 %v1651, %v1659
    %1662 = vst [vmem:[#allocation1] sm:$0xff] %v1660
    %s1663 = scalar_lea.vmem [#allocation1], 6
    %v1664 = vld [vmem:[%s1663] ss:$9 sm:$0xff]
    %s1665 = scalar_lea.vmem [#allocation1], 7
    %v1666 = vld [vmem:[%s1665] ss:$9 sm:$0xff]
    %1669 = vst [vmem:[#allocation11 + $0x7] sm:$0x1] %v1664
    %1670 = vst [vmem:[#allocation11 + $0xf] sm:$0x1] %v1666
    %1671 = vst [vmem:[#allocation12 - $0x6] sm:$0xc0] %v1660
    %1672 = vst [vmem:[#allocation14 - $0x6] sm:$0xc0] %v1658
    // Predicated region
    $region46: #{tpu_custom_call.1} parent=1 // pred_check
      _
    $region47: #{tpu_custom_call.1} parent=1 // pred_check_branch
      %1674 = sbr.rel (0) target = $region49
    $region48: #{tpu_custom_call.1} parent=1 // pred_region
      %1676 = vsyncadd [#allocation5], 0
      %s1677 = sshll.u32 [#allocation11], 4
      %s1678 = int_to_ptr.vmem [resolvable:$true] %s1677
      %s1679 = sshll.u32 %s6, 4
      %s1680 = int_to_ptr.hbm [resolvable:$true] %s1679
      %1685 = dma.vmem_to_hbm [thread:$0]  %s1678, 256, %s1680, [#allocation5], 128, 128, 8
    $region49: #{tpu_custom_call.1} parent=1 // pred_fallthru
      _
    // Predicated region
    $region50: #{tpu_custom_call.1} parent=1 // pred_check
      _
    $region51: #{tpu_custom_call.1} parent=1 // pred_check_branch
      %1687 = sbr.rel (0) target = $region53
    $region52: #{tpu_custom_call.1} parent=1 // pred_region
      %1689 = vsyncadd [#allocation13], 0
      %s1691 = sshll.u32 [#allocation12], 4
      %s1692 = int_to_ptr.vmem [resolvable:$true] %s1691
      %s1693 = sshll.u32 %s7, 4
      %s1694 = int_to_ptr.hbm [resolvable:$true] %s1693
      %1696 = dma.vmem_to_hbm [thread:$0]  %s1692, 32, %s1694, [#allocation13]
    $region53: #{tpu_custom_call.1} parent=1 // pred_fallthru
      _
    // Predicated region
    $region54: #{tpu_custom_call.1} parent=1 // pred_check
      _
    $region55: #{tpu_custom_call.1} parent=1 // pred_check_branch
      %1698 = sbr.rel (0) target = $region57
    $region56: #{tpu_custom_call.1} parent=1 // pred_region
      %1700 = vsyncadd [#allocation13], 0
      %s1702 = sshll.u32 [#allocation14], 4
      %s1703 = int_to_ptr.vmem [resolvable:$true] %s1702
      %s1704 = sshll.u32 %s8, 4
      %s1705 = int_to_ptr.hbm [resolvable:$true] %s1704
      %1707 = dma.vmem_to_hbm [thread:$0]  %s1703, 32, %s1705, [#allocation13]
    $region57: #{tpu_custom_call.1} parent=1 // pred_fallthru
      _
    // Predicated region
    $region58: #{tpu_custom_call.1} parent=1 // pred_check
      _
    $region59: #{tpu_custom_call.1} parent=1 // pred_check_branch
      %1709 = sbr.rel (0) target = $region61
    $region60: #{tpu_custom_call.1} parent=1 // pred_region
      %1711 = dma.done [#allocation5], 256
    $region61: #{tpu_custom_call.1} parent=1 // pred_fallthru
      _
    // Predicated region
    $region62: #{tpu_custom_call.1} parent=1 // pred_check
      _
    $region63: #{tpu_custom_call.1} parent=1 // pred_check_branch
      %1713 = sbr.rel (0) target = $region65
    $region64: #{tpu_custom_call.1} parent=1 // pred_region
      %1715 = dma.done [#allocation13], 32
    $region65: #{tpu_custom_call.1} parent=1 // pred_fallthru
      _
    // Predicated region
    $region66: #{tpu_custom_call.1} parent=1 // pred_check
      _
    $region67: #{tpu_custom_call.1} parent=1 // pred_check_branch
      %1717 = sbr.rel (0) target = $region69
    $region68: #{tpu_custom_call.1} parent=1 // pred_region
      %1719 = dma.done [#allocation13], 32
    $region69: #{tpu_custom_call.1} parent=1 // pred_fallthru
      _
    %1720 = vsyncpa [#allocation4], 1
    %1721 = vsyncpa [#allocation7], 1
    %1722 = vsyncpa [#allocation10], 1
    %1723 = vsyncpa [#allocation5], 1
    %1724 = vsyncpa [#allocation13], 1

</llo_original>
